<compile_context>
chip_gen: v7x
topology: tpu7x:2x2x1
jax: 0.10.0
libtpu: 0.0.40
codegen_flags: <defaults>
</compile_context>

<pallas_src>
import math

import jax
import jax.numpy as jnp
from jax import lax
from jax.experimental import pallas as pl
from jax.experimental.pallas import tpu as pltpu


def _round_up(x, m):
    return (x + m - 1) // m * m


# ---------------------------------------------------------------------------
# Fully fused kernel: all conv+ReLU layers of one image in one grid step.
# Activation lives flat on the ORIGINAL HxW grid (lane dim = Npad >= H*W,
# multiple of 128); tap (kh, kw) is a read of the scratch at lane offset
# kh*W + kw.  Invalid (margin) columns carry garbage that is never read for
# valid output positions and is sliced away in the wrapper.
# ---------------------------------------------------------------------------
def _make_fused_kernel(layer_dims, row_stride, np_cols, n_layers):
    # layer_dims: tuple of (cin, cout, k) per layer; row_stride = original W.
    def kernel(*refs):
        x_ref = refs[0]                       # (1, Cin0, Npad) input block
        o_ref = refs[1 + 2 * n_layers]        # (1, Cout_last, Npad) output block
        act_ref = refs[2 + 2 * n_layers]      # (C_max, Npad + pad_cols) f32 scratch

        cin0 = layer_dims[0][0]
        act_ref[:cin0, :np_cols] = x_ref[0].astype(jnp.float32)

        for l, (cin, cout, k) in enumerate(layer_dims):
            w_ref = refs[1 + 2 * l]           # (k*k, Cout, Cin) in compute dtype
            b_ref = refs[2 + 2 * l]           # (Cout, 1) f32
            w_dtype = w_ref.dtype
            acc = jnp.zeros((cout, np_cols), jnp.float32)
            for kh in range(k):
                for kw in range(k):
                    d = kh * row_stride + kw
                    rhs = act_ref[:cin, d:d + np_cols].astype(w_dtype)   # (Cin, Npad)
                    acc = acc + jnp.dot(w_ref[kh * k + kw], rhs,
                                        preferred_element_type=jnp.float32)
            y = jnp.maximum(acc + b_ref[...], 0.0)        # bias + ReLU in f32, lane-dense
            if l + 1 < n_layers:
                act_ref[:cout, :np_cols] = y              # stays in VMEM (no HBM trip)
            else:
                o_ref[0] = y.astype(o_ref.dtype)
    return kernel


def _fused_forward(x_nchw, layers, *, compute_dtype):
    B, C, H, W = x_nchw.shape
    n_layers = len(layers)
    HW = H * W
    NP = _round_up(HW, 128)

    h_out, w_out = H, W
    for lyr in layers:
        h_out = h_out - lyr["k"] + 1
        w_out = w_out - lyr["k"] + 1
    cout_last = layers[-1]["cout"]
    max_c = max(8, C, *(l["cout"] for l in layers))
    max_delta = max((l["k"] - 1) * (W + 1) for l in layers)
    pad_cols = _round_up(max(max_delta, 1), 128)

    x_flat = x_nchw.reshape(B, C, HW).astype(compute_dtype)
    if NP != HW:
        x_flat = jnp.pad(x_flat, ((0, 0), (0, 0), (0, NP - HW)))

    args = [x_flat]
    in_specs = [pl.BlockSpec((1, C, NP), lambda b: (b, 0, 0))]
    for lyr in layers:
        k, ci, co = lyr["k"], lyr["cin"], lyr["cout"]
        args.append(lyr["w_taps"].astype(compute_dtype))          # (k*k, Cout, Cin)
        args.append(lyr["b_col"])                                 # (Cout, 1) f32
        in_specs.append(pl.BlockSpec((k * k, co, ci), lambda b: (0, 0, 0)))  # resident
        in_specs.append(pl.BlockSpec((co, 1), lambda b: (0, 0)))             # resident

    kernel = _make_fused_kernel(
        tuple((l["cin"], l["cout"], l["k"]) for l in layers), W, NP, n_layers)

    flops = 2 * B * sum(l["cout"] * l["k"] * l["k"] * l["cin"] * NP for l in layers)
    bytes_accessed = sum(int(a.size) * a.dtype.itemsize for a in args) \
        + B * cout_last * NP * 4

    y_full = pl.pallas_call(
        kernel,
        out_shape=jax.ShapeDtypeStruct((B, cout_last, NP), jnp.float32),
        grid=(B,),
        in_specs=in_specs,
        out_specs=pl.BlockSpec((1, cout_last, NP), lambda b: (b, 0, 0)),
        scratch_shapes=[pltpu.VMEM((max_c, NP + pad_cols), jnp.float32)],
        compiler_params=pltpu.CompilerParams(dimension_semantics=("parallel",)),
        cost_estimate=pl.CostEstimate(flops=int(flops), transcendentals=0,
                                      bytes_accessed=int(bytes_accessed)),
    )(*args)

    y = y_full[:, :, :HW].reshape(B, cout_last, H, W)[:, :, :h_out, :w_out]
    return y


# ---------------------------------------------------------------------------
# Fallback path (strides > 1 / nonzero paddings): per-layer wrapper-side im2col
# feeding a single lane-dense GEMM+bias+ReLU pallas_call per layer.
# ---------------------------------------------------------------------------
def _gemm_bias_relu_kernel(p_ref, w_ref, b_ref, o_ref):
    # p_ref: (1, K, Npad)   w_ref: (Cout, K)   b_ref: (Cout, 1)   o_ref: (1, Cout, Npad)
    acc = jnp.dot(w_ref[...], p_ref[0], preferred_element_type=jnp.float32)
    o_ref[0] = jnp.maximum(acc + b_ref[...], 0.0).astype(o_ref.dtype)


def _conv_gemm_bias_relu(patches, w_t, b_col):
    B, K, Np = patches.shape
    Cout = w_t.shape[0]
    flops = 2 * B * Cout * K * Np
    bytes_accessed = (int(patches.size) * patches.dtype.itemsize
                      + int(w_t.size) * w_t.dtype.itemsize
                      + int(b_col.size) * 4 + B * Cout * Np * 4)
    return pl.pallas_call(
        _gemm_bias_relu_kernel,
        out_shape=jax.ShapeDtypeStruct((B, Cout, Np), jnp.float32),
        grid=(B,),
        in_specs=[
            pl.BlockSpec((1, K, Np), lambda b: (b, 0, 0)),
            pl.BlockSpec((Cout, K), lambda b: (0, 0)),     # resident across steps
            pl.BlockSpec((Cout, 1), lambda b: (0, 0)),     # resident across steps
        ],
        out_specs=pl.BlockSpec((1, Cout, Np), lambda b: (b, 0, 0)),
        compiler_params=pltpu.CompilerParams(dimension_semantics=("parallel",)),
        cost_estimate=pl.CostEstimate(flops=int(flops), transcendentals=0,
                                      bytes_accessed=int(bytes_accessed)),
    )(patches, w_t, b_col)


def _im2col_nchw(x, k, s):
    """x: (B, C, H, W) -> (B, k*k*C, Ho*Wo), rows ordered (kh, kw, c)."""
    B, C, H, W = x.shape
    Ho = (H - k) // s + 1
    Wo = (W - k) // s + 1
    cols = []
    for kh in range(k):
        for kw in range(k):
            win = lax.slice(
                x, (0, 0, kh, kw),
                (B, C, kh + (Ho - 1) * s + 1, kw + (Wo - 1) * s + 1),
                (1, 1, s, s))                            # (B, C, Ho, Wo)
            cols.append(win.reshape(B, C, Ho * Wo))
    return jnp.concatenate(cols, axis=1), Ho, Wo


def _layered_forward(x_nchw, layers, *, compute_dtype):
    x = x_nchw.astype(jnp.float32)                       # f32 inter-layer activations
    for lyr in layers:
        k, s, p = lyr["k"], lyr["stride"], lyr["pad"]
        if p:
            x = jnp.pad(x, ((0, 0), (0, 0), (p, p), (p, p)))
        B = x.shape[0]
        patches, Ho, Wo = _im2col_nchw(x, k, s)          # (B, K, N)
        N = Ho * Wo
        Np = _round_up(N, 128)                           # lane-dense GEMM / stores
        if Np != N:
            patches = jnp.pad(patches, ((0, 0), (0, 0), (0, Np - N)))
        y = _conv_gemm_bias_relu(patches.astype(compute_dtype),
                                 lyr["w_t"].astype(compute_dtype),
                                 lyr["b_col"])           # (B, Cout, Np) f32
        x = y[:, :, :N].reshape(B, lyr["cout"], Ho, Wo)
    return x


# ---------------------------------------------------------------------------
# Module mirror of the PyTorch Conv2dModel (nonlinearity=ReLU, use_maxpool=False).
# ---------------------------------------------------------------------------
class Conv2dModelPallas:
    def __init__(self, in_channels, channels, kernel_sizes, strides,
                 paddings=None, use_maxpool=False, key=None):
        if paddings is None:
            paddings = [0 for _ in range(len(channels))]
        assert len(channels) == len(kernel_sizes) == len(strides) == len(paddings)
        # TODO(synk): MaxPool2d path (use_maxpool=True) not implemented.
        assert not use_maxpool
        if key is None:
            key = jax.random.PRNGKey(0)
        in_chs = [in_channels] + list(channels[:-1])
        self.layers = []
        for ic, oc, k, s, p in zip(in_chs, channels, kernel_sizes, strides, paddings):
            key, wk, bk = jax.random.split(key, 3)
            bound = 1.0 / math.sqrt(ic * k * k)
            w = jax.random.uniform(wk, (oc, ic, k, k), jnp.float32, -bound, bound)  # OIHW
            b = jax.random.uniform(bk, (oc,), jnp.float32, -bound, bound)
            self.layers.append(dict(
                w_oihw=w, b=b,
                # (k*k, Cout, Cin), tap index = kh*k + kw — for the fused kernel.
                w_taps=jnp.transpose(w, (2, 3, 0, 1)).reshape(k * k, oc, ic),
                # (Cout, k*k*Cin) with rows ordered (kh, kw, cin) — for the fallback GEMM.
                w_t=jnp.transpose(w, (0, 2, 3, 1)).reshape(oc, k * k * ic),
                b_col=b.reshape(oc, 1),
                cin=int(ic), cout=int(oc), k=int(k), stride=int(s), pad=int(p)))
        self._fusable = all(l["stride"] == 1 and l["pad"] == 0 for l in self.layers)

    def __call__(self, x_nchw, *, compute_dtype=jnp.float32):
        """Input/output are NCHW, exactly like the PyTorch module."""
        if self._fusable:
            return _fused_forward(x_nchw, self.layers, compute_dtype=compute_dtype)
        # TODO(synk): fuse the strided / padded configurations as well.
        return _layered_forward(x_nchw, self.layers, compute_dtype=compute_dtype)


def _reference_forward(model, x_nchw):
    """Plain-JAX reference (lax conv) for correctness checks."""
    x = x_nchw
    for lyr in model.layers:
        s, p = lyr["stride"], lyr["pad"]
        y = lax.conv_general_dilated(
            x, lyr["w_oihw"], window_strides=(s, s), padding=[(p, p), (p, p)],
            dimension_numbers=("NCHW", "OIHW", "NCHW"))
        x = jnp.maximum(y + lyr["b"][None, :, None, None], 0.0)
    return x


if __name__ == "__main__":
    key = jax.random.PRNGKey(0)
    key, xk = jax.random.split(key)

    # Conv2dModel(in_channels=4, channels=[8,16], kernel_sizes=[3,3], strides=[1,1])
    model = Conv2dModelPallas(in_channels=4, channels=[8, 16],
                              kernel_sizes=[3, 3], strides=[1, 1], key=key)
    x = jax.random.normal(xk, (2, 4, 16, 16), jnp.float32)        # [B,C,H,W]

    # f32 path (fully fused single pallas_call): tight check vs. the lax reference.
    out = jax.block_until_ready(jax.jit(lambda v: model(v))(x))
    assert out.shape == (2, 16, 12, 12), out.shape
    ref = jax.block_until_ready(jax.jit(lambda v: _reference_forward(model, v))(x))
    assert jnp.allclose(out, ref, atol=5e-4, rtol=5e-4), \
        float(jnp.max(jnp.abs(out - ref)))

    # bf16 matmul operands, f32 accumulation and f32 inter-layer activations.
    out_bf16 = jax.block_until_ready(
        jax.jit(lambda v: model(v, compute_dtype=jnp.bfloat16))(x))
    assert out_bf16.shape == (2, 16, 12, 12), out_bf16.shape
    assert jnp.allclose(out_bf16, ref, atol=5e-2, rtol=5e-2), \
        float(jnp.max(jnp.abs(out_bf16 - ref)))

    # Strided / padded configuration exercises the per-layer fallback path.
    key, k2 = jax.random.split(key)
    model2 = Conv2dModelPallas(in_channels=4, channels=[8, 16], kernel_sizes=[3, 3],
                               strides=[2, 1], paddings=[1, 0], key=k2)
    out2 = jax.block_until_ready(jax.jit(lambda v: model2(v))(x))
    ref2 = jax.block_until_ready(jax.jit(lambda v: _reference_forward(model2, v))(x))
    assert out2.shape == ref2.shape == (2, 16, 6, 6), (out2.shape, ref2.shape)
    assert jnp.allclose(out2, ref2, atol=5e-4, rtol=5e-4), \
        float(jnp.max(jnp.abs(out2 - ref2)))

    print("KERNEL_OK")
</pallas_src>

<mosaic_0001>
module attributes {stable_mosaic.version = 11 : i64} {
  func.func @kernel(%arg0: i32, %arg1: memref<1x4x256xf32, #tpu.memory_space<vmem>>, %arg2: memref<9x8x4xf32, #tpu.memory_space<vmem>>, %arg3: memref<8x1xf32, #tpu.memory_space<vmem>>, %arg4: memref<9x16x8xf32, #tpu.memory_space<vmem>>, %arg5: memref<16x1xf32, #tpu.memory_space<vmem>>, %arg6: memref<1x16x256xf32, #tpu.memory_space<vmem>>, %arg7: memref<16x384xf32, #tpu.memory_space<vmem>>) attributes {dimension_semantics = [#tpu.dimension_semantics<parallel>], iteration_bounds = array<i64: 2>, scalar_prefetch = 0 : i64, scratch_operands = 1 : i64, tpu.core_type = #tpu.core_type<tc>, window_params = [{transform_indices = @transform_0, window_bounds = array<i64: 1, 4, 256>}, {pipeline_mode = #tpu.pipeline_mode<synchronous>, transform_indices = @transform_1, window_bounds = array<i64: 9, 8, 4>}, {pipeline_mode = #tpu.pipeline_mode<synchronous>, transform_indices = @transform_2, window_bounds = array<i64: 8, 1>}, {pipeline_mode = #tpu.pipeline_mode<synchronous>, transform_indices = @transform_3, window_bounds = array<i64: 9, 16, 8>}, {pipeline_mode = #tpu.pipeline_mode<synchronous>, transform_indices = @transform_4, window_bounds = array<i64: 16, 1>}, {transform_indices = @transform_5, window_bounds = array<i64: 1, 16, 256>}]} {
    %c0 = arith.constant 0 : index
    %c0_0 = arith.constant 0 : index
    %c0_1 = arith.constant 0 : index
    %0 = vector.load %arg1[%c0, %c0_0, %c0_1] : memref<1x4x256xf32, #tpu.memory_space<vmem>>, vector<1x4x256xf32>
    %1 = vector.shape_cast %0 : vector<1x4x256xf32> to vector<4x256xf32>
    %c0_2 = arith.constant 0 : index
    %c0_3 = arith.constant 0 : index
    %2 = vector.load %arg7[%c0_2, %c0_3] : memref<16x384xf32, #tpu.memory_space<vmem>>, vector<4x256xf32>
    tpu.vector_store %arg7[%c0_2, %c0_3], %1 {strides = array<i32>} : memref<16x384xf32, #tpu.memory_space<vmem>>, vector<4x256xf32>,
    %cst = arith.constant 0.000000e+00 : f32
    %3 = vector.broadcast %cst : f32 to vector<8x256xf32>
    %c0_4 = arith.constant 0 : index
    %c0_5 = arith.constant 0 : index
    %4 = vector.load %arg7[%c0_4, %c0_5] : memref<16x384xf32, #tpu.memory_space<vmem>>, vector<4x256xf32>
    %c0_6 = arith.constant 0 : index
    %c0_7 = arith.constant 0 : index
    %c0_8 = arith.constant 0 : index
    %5 = vector.load %arg2[%c0_6, %c0_7, %c0_8] : memref<9x8x4xf32, #tpu.memory_space<vmem>>, vector<1x8x4xf32>
    %6 = vector.shape_cast %5 : vector<1x8x4xf32> to vector<8x4xf32>
    %cst_9 = arith.constant dense<0.000000e+00> : vector<8x256xf32>
    %7 = tpu.matmul %6, %4, %cst_9 {dimension_numbers = #tpu.dot_dimension_numbers<[1], [0], [0], [1], [0, 0, 1, 1], [], []>} : vector<8x4xf32>, vector<4x256xf32>, vector<8x256xf32> -> vector<8x256xf32>
    %8 = arith.addf %3, %7 : vector<8x256xf32>
    %c0_10 = arith.constant 0 : index
    %c1 = arith.constant 1 : index
    %9 = vector.load %arg7[%c0_10, %c1] : memref<16x384xf32, #tpu.memory_space<vmem>>, vector<4x256xf32>
    %c1_11 = arith.constant 1 : index
    %c0_12 = arith.constant 0 : index
    %c0_13 = arith.constant 0 : index
    %10 = vector.load %arg2[%c1_11, %c0_12, %c0_13] : memref<9x8x4xf32, #tpu.memory_space<vmem>>, vector<1x8x4xf32>
    %11 = vector.shape_cast %10 : vector<1x8x4xf32> to vector<8x4xf32>
    %cst_14 = arith.constant dense<0.000000e+00> : vector<8x256xf32>
    %12 = tpu.matmul %11, %9, %cst_14 {dimension_numbers = #tpu.dot_dimension_numbers<[1], [0], [0], [1], [0, 0, 1, 1], [], []>} : vector<8x4xf32>, vector<4x256xf32>, vector<8x256xf32> -> vector<8x256xf32>
    %13 = arith.addf %8, %12 : vector<8x256xf32>
    %c0_15 = arith.constant 0 : index
    %c2 = arith.constant 2 : index
    %14 = vector.load %arg7[%c0_15, %c2] : memref<16x384xf32, #tpu.memory_space<vmem>>, vector<4x256xf32>
    %c2_16 = arith.constant 2 : index
    %c0_17 = arith.constant 0 : index
    %c0_18 = arith.constant 0 : index
    %15 = vector.load %arg2[%c2_16, %c0_17, %c0_18] : memref<9x8x4xf32, #tpu.memory_space<vmem>>, vector<1x8x4xf32>
    %16 = vector.shape_cast %15 : vector<1x8x4xf32> to vector<8x4xf32>
    %cst_19 = arith.constant dense<0.000000e+00> : vector<8x256xf32>
    %17 = tpu.matmul %16, %14, %cst_19 {dimension_numbers = #tpu.dot_dimension_numbers<[1], [0], [0], [1], [0, 0, 1, 1], [], []>} : vector<8x4xf32>, vector<4x256xf32>, vector<8x256xf32> -> vector<8x256xf32>
    %18 = arith.addf %13, %17 : vector<8x256xf32>
    %c0_20 = arith.constant 0 : index
    %c16 = arith.constant 16 : index
    %19 = vector.load %arg7[%c0_20, %c16] : memref<16x384xf32, #tpu.memory_space<vmem>>, vector<4x256xf32>
    %c3 = arith.constant 3 : index
    %c0_21 = arith.constant 0 : index
    %c0_22 = arith.constant 0 : index
    %20 = vector.load %arg2[%c3, %c0_21, %c0_22] : memref<9x8x4xf32, #tpu.memory_space<vmem>>, vector<1x8x4xf32>
    %21 = vector.shape_cast %20 : vector<1x8x4xf32> to vector<8x4xf32>
    %cst_23 = arith.constant dense<0.000000e+00> : vector<8x256xf32>
    %22 = tpu.matmul %21, %19, %cst_23 {dimension_numbers = #tpu.dot_dimension_numbers<[1], [0], [0], [1], [0, 0, 1, 1], [], []>} : vector<8x4xf32>, vector<4x256xf32>, vector<8x256xf32> -> vector<8x256xf32>
    %23 = arith.addf %18, %22 : vector<8x256xf32>
    %c0_24 = arith.constant 0 : index
    %c17 = arith.constant 17 : index
    %24 = vector.load %arg7[%c0_24, %c17] : memref<16x384xf32, #tpu.memory_space<vmem>>, vector<4x256xf32>
    %c4 = arith.constant 4 : index
    %c0_25 = arith.constant 0 : index
    %c0_26 = arith.constant 0 : index
    %25 = vector.load %arg2[%c4, %c0_25, %c0_26] : memref<9x8x4xf32, #tpu.memory_space<vmem>>, vector<1x8x4xf32>
    %26 = vector.shape_cast %25 : vector<1x8x4xf32> to vector<8x4xf32>
    %cst_27 = arith.constant dense<0.000000e+00> : vector<8x256xf32>
    %27 = tpu.matmul %26, %24, %cst_27 {dimension_numbers = #tpu.dot_dimension_numbers<[1], [0], [0], [1], [0, 0, 1, 1], [], []>} : vector<8x4xf32>, vector<4x256xf32>, vector<8x256xf32> -> vector<8x256xf32>
    %28 = arith.addf %23, %27 : vector<8x256xf32>
    %c0_28 = arith.constant 0 : index
    %c18 = arith.constant 18 : index
    %29 = vector.load %arg7[%c0_28, %c18] : memref<16x384xf32, #tpu.memory_space<vmem>>, vector<4x256xf32>
    %c5 = arith.constant 5 : index
    %c0_29 = arith.constant 0 : index
    %c0_30 = arith.constant 0 : index
    %30 = vector.load %arg2[%c5, %c0_29, %c0_30] : memref<9x8x4xf32, #tpu.memory_space<vmem>>, vector<1x8x4xf32>
    %31 = vector.shape_cast %30 : vector<1x8x4xf32> to vector<8x4xf32>
    %cst_31 = arith.constant dense<0.000000e+00> : vector<8x256xf32>
    %32 = tpu.matmul %31, %29, %cst_31 {dimension_numbers = #tpu.dot_dimension_numbers<[1], [0], [0], [1], [0, 0, 1, 1], [], []>} : vector<8x4xf32>, vector<4x256xf32>, vector<8x256xf32> -> vector<8x256xf32>
    %33 = arith.addf %28, %32 : vector<8x256xf32>
    %c0_32 = arith.constant 0 : index
    %c32 = arith.constant 32 : index
    %34 = vector.load %arg7[%c0_32, %c32] : memref<16x384xf32, #tpu.memory_space<vmem>>, vector<4x256xf32>
    %c6 = arith.constant 6 : index
    %c0_33 = arith.constant 0 : index
    %c0_34 = arith.constant 0 : index
    %35 = vector.load %arg2[%c6, %c0_33, %c0_34] : memref<9x8x4xf32, #tpu.memory_space<vmem>>, vector<1x8x4xf32>
    %36 = vector.shape_cast %35 : vector<1x8x4xf32> to vector<8x4xf32>
    %cst_35 = arith.constant dense<0.000000e+00> : vector<8x256xf32>
    %37 = tpu.matmul %36, %34, %cst_35 {dimension_numbers = #tpu.dot_dimension_numbers<[1], [0], [0], [1], [0, 0, 1, 1], [], []>} : vector<8x4xf32>, vector<4x256xf32>, vector<8x256xf32> -> vector<8x256xf32>
    %38 = arith.addf %33, %37 : vector<8x256xf32>
    %c0_36 = arith.constant 0 : index
    %c33 = arith.constant 33 : index
    %39 = vector.load %arg7[%c0_36, %c33] : memref<16x384xf32, #tpu.memory_space<vmem>>, vector<4x256xf32>
    %c7 = arith.constant 7 : index
    %c0_37 = arith.constant 0 : index
    %c0_38 = arith.constant 0 : index
    %40 = vector.load %arg2[%c7, %c0_37, %c0_38] : memref<9x8x4xf32, #tpu.memory_space<vmem>>, vector<1x8x4xf32>
    %41 = vector.shape_cast %40 : vector<1x8x4xf32> to vector<8x4xf32>
    %cst_39 = arith.constant dense<0.000000e+00> : vector<8x256xf32>
    %42 = tpu.matmul %41, %39, %cst_39 {dimension_numbers = #tpu.dot_dimension_numbers<[1], [0], [0], [1], [0, 0, 1, 1], [], []>} : vector<8x4xf32>, vector<4x256xf32>, vector<8x256xf32> -> vector<8x256xf32>
    %43 = arith.addf %38, %42 : vector<8x256xf32>
    %c0_40 = arith.constant 0 : index
    %c34 = arith.constant 34 : index
    %44 = vector.load %arg7[%c0_40, %c34] : memref<16x384xf32, #tpu.memory_space<vmem>>, vector<4x256xf32>
    %c8 = arith.constant 8 : index
    %c0_41 = arith.constant 0 : index
    %c0_42 = arith.constant 0 : index
    %45 = vector.load %arg2[%c8, %c0_41, %c0_42] : memref<9x8x4xf32, #tpu.memory_space<vmem>>, vector<1x8x4xf32>
    %46 = vector.shape_cast %45 : vector<1x8x4xf32> to vector<8x4xf32>
    %cst_43 = arith.constant dense<0.000000e+00> : vector<8x256xf32>
    %47 = tpu.matmul %46, %44, %cst_43 {dimension_numbers = #tpu.dot_dimension_numbers<[1], [0], [0], [1], [0, 0, 1, 1], [], []>} : vector<8x4xf32>, vector<4x256xf32>, vector<8x256xf32> -> vector<8x256xf32>
    %48 = arith.addf %43, %47 : vector<8x256xf32>
    %c0_44 = arith.constant 0 : index
    %c0_45 = arith.constant 0 : index
    %49 = vector.load %arg3[%c0_44, %c0_45] : memref<8x1xf32, #tpu.memory_space<vmem>>, vector<8x1xf32>
    %50 = vector.broadcast %49 : vector<8x1xf32> to vector<8x256xf32>
    %51 = arith.addf %48, %50 : vector<8x256xf32>
    %cst_46 = arith.constant 0.000000e+00 : f32
    %52 = vector.broadcast %cst_46 : f32 to vector<8x256xf32>
    %53 = arith.maximumf %51, %52 : vector<8x256xf32>
    %c0_47 = arith.constant 0 : index
    %c0_48 = arith.constant 0 : index
    %54 = vector.load %arg7[%c0_47, %c0_48] : memref<16x384xf32, #tpu.memory_space<vmem>>, vector<8x256xf32>
    tpu.vector_store %arg7[%c0_47, %c0_48], %53 {strides = array<i32>} : memref<16x384xf32, #tpu.memory_space<vmem>>, vector<8x256xf32>,
    %cst_49 = arith.constant 0.000000e+00 : f32
    %55 = vector.broadcast %cst_49 : f32 to vector<16x256xf32>
    %c0_50 = arith.constant 0 : index
    %c0_51 = arith.constant 0 : index
    %56 = vector.load %arg7[%c0_50, %c0_51] : memref<16x384xf32, #tpu.memory_space<vmem>>, vector<8x256xf32>
    %c0_52 = arith.constant 0 : index
    %c0_53 = arith.constant 0 : index
    %c0_54 = arith.constant 0 : index
    %57 = vector.load %arg4[%c0_52, %c0_53, %c0_54] : memref<9x16x8xf32, #tpu.memory_space<vmem>>, vector<1x16x8xf32>
    %58 = vector.shape_cast %57 : vector<1x16x8xf32> to vector<16x8xf32>
    %cst_55 = arith.constant dense<0.000000e+00> : vector<16x256xf32>
    %59 = tpu.matmul %58, %56, %cst_55 {dimension_numbers = #tpu.dot_dimension_numbers<[1], [0], [0], [1], [0, 0, 1, 1], [], []>} : vector<16x8xf32>, vector<8x256xf32>, vector<16x256xf32> -> vector<16x256xf32>
    %60 = arith.addf %55, %59 : vector<16x256xf32>
    %c0_56 = arith.constant 0 : index
    %c1_57 = arith.constant 1 : index
    %61 = vector.load %arg7[%c0_56, %c1_57] : memref<16x384xf32, #tpu.memory_space<vmem>>, vector<8x256xf32>
    %c1_58 = arith.constant 1 : index
    %c0_59 = arith.constant 0 : index
    %c0_60 = arith.constant 0 : index
    %62 = vector.load %arg4[%c1_58, %c0_59, %c0_60] : memref<9x16x8xf32, #tpu.memory_space<vmem>>, vector<1x16x8xf32>
    %63 = vector.shape_cast %62 : vector<1x16x8xf32> to vector<16x8xf32>
    %cst_61 = arith.constant dense<0.000000e+00> : vector<16x256xf32>
    %64 = tpu.matmul %63, %61, %cst_61 {dimension_numbers = #tpu.dot_dimension_numbers<[1], [0], [0], [1], [0, 0, 1, 1], [], []>} : vector<16x8xf32>, vector<8x256xf32>, vector<16x256xf32> -> vector<16x256xf32>
    %65 = arith.addf %60, %64 : vector<16x256xf32>
    %c0_62 = arith.constant 0 : index
    %c2_63 = arith.constant 2 : index
    %66 = vector.load %arg7[%c0_62, %c2_63] : memref<16x384xf32, #tpu.memory_space<vmem>>, vector<8x256xf32>
    %c2_64 = arith.constant 2 : index
    %c0_65 = arith.constant 0 : index
    %c0_66 = arith.constant 0 : index
    %67 = vector.load %arg4[%c2_64, %c0_65, %c0_66] : memref<9x16x8xf32, #tpu.memory_space<vmem>>, vector<1x16x8xf32>
    %68 = vector.shape_cast %67 : vector<1x16x8xf32> to vector<16x8xf32>
    %cst_67 = arith.constant dense<0.000000e+00> : vector<16x256xf32>
    %69 = tpu.matmul %68, %66, %cst_67 {dimension_numbers = #tpu.dot_dimension_numbers<[1], [0], [0], [1], [0, 0, 1, 1], [], []>} : vector<16x8xf32>, vector<8x256xf32>, vector<16x256xf32> -> vector<16x256xf32>
    %70 = arith.addf %65, %69 : vector<16x256xf32>
    %c0_68 = arith.constant 0 : index
    %c16_69 = arith.constant 16 : index
    %71 = vector.load %arg7[%c0_68, %c16_69] : memref<16x384xf32, #tpu.memory_space<vmem>>, vector<8x256xf32>
    %c3_70 = arith.constant 3 : index
    %c0_71 = arith.constant 0 : index
    %c0_72 = arith.constant 0 : index
    %72 = vector.load %arg4[%c3_70, %c0_71, %c0_72] : memref<9x16x8xf32, #tpu.memory_space<vmem>>, vector<1x16x8xf32>
    %73 = vector.shape_cast %72 : vector<1x16x8xf32> to vector<16x8xf32>
    %cst_73 = arith.constant dense<0.000000e+00> : vector<16x256xf32>
    %74 = tpu.matmul %73, %71, %cst_73 {dimension_numbers = #tpu.dot_dimension_numbers<[1], [0], [0], [1], [0, 0, 1, 1], [], []>} : vector<16x8xf32>, vector<8x256xf32>, vector<16x256xf32> -> vector<16x256xf32>
    %75 = arith.addf %70, %74 : vector<16x256xf32>
    %c0_74 = arith.constant 0 : index
    %c17_75 = arith.constant 17 : index
    %76 = vector.load %arg7[%c0_74, %c17_75] : memref<16x384xf32, #tpu.memory_space<vmem>>, vector<8x256xf32>
    %c4_76 = arith.constant 4 : index
    %c0_77 = arith.constant 0 : index
    %c0_78 = arith.constant 0 : index
    %77 = vector.load %arg4[%c4_76, %c0_77, %c0_78] : memref<9x16x8xf32, #tpu.memory_space<vmem>>, vector<1x16x8xf32>
    %78 = vector.shape_cast %77 : vector<1x16x8xf32> to vector<16x8xf32>
    %cst_79 = arith.constant dense<0.000000e+00> : vector<16x256xf32>
    %79 = tpu.matmul %78, %76, %cst_79 {dimension_numbers = #tpu.dot_dimension_numbers<[1], [0], [0], [1], [0, 0, 1, 1], [], []>} : vector<16x8xf32>, vector<8x256xf32>, vector<16x256xf32> -> vector<16x256xf32>
    %80 = arith.addf %75, %79 : vector<16x256xf32>
    %c0_80 = arith.constant 0 : index
    %c18_81 = arith.constant 18 : index
    %81 = vector.load %arg7[%c0_80, %c18_81] : memref<16x384xf32, #tpu.memory_space<vmem>>, vector<8x256xf32>
    %c5_82 = arith.constant 5 : index
    %c0_83 = arith.constant 0 : index
    %c0_84 = arith.constant 0 : index
    %82 = vector.load %arg4[%c5_82, %c0_83, %c0_84] : memref<9x16x8xf32, #tpu.memory_space<vmem>>, vector<1x16x8xf32>
    %83 = vector.shape_cast %82 : vector<1x16x8xf32> to vector<16x8xf32>
    %cst_85 = arith.constant dense<0.000000e+00> : vector<16x256xf32>
    %84 = tpu.matmul %83, %81, %cst_85 {dimension_numbers = #tpu.dot_dimension_numbers<[1], [0], [0], [1], [0, 0, 1, 1], [], []>} : vector<16x8xf32>, vector<8x256xf32>, vector<16x256xf32> -> vector<16x256xf32>
    %85 = arith.addf %80, %84 : vector<16x256xf32>
    %c0_86 = arith.constant 0 : index
    %c32_87 = arith.constant 32 : index
    %86 = vector.load %arg7[%c0_86, %c32_87] : memref<16x384xf32, #tpu.memory_space<vmem>>, vector<8x256xf32>
    %c6_88 = arith.constant 6 : index
    %c0_89 = arith.constant 0 : index
    %c0_90 = arith.constant 0 : index
    %87 = vector.load %arg4[%c6_88, %c0_89, %c0_90] : memref<9x16x8xf32, #tpu.memory_space<vmem>>, vector<1x16x8xf32>
    %88 = vector.shape_cast %87 : vector<1x16x8xf32> to vector<16x8xf32>
    %cst_91 = arith.constant dense<0.000000e+00> : vector<16x256xf32>
    %89 = tpu.matmul %88, %86, %cst_91 {dimension_numbers = #tpu.dot_dimension_numbers<[1], [0], [0], [1], [0, 0, 1, 1], [], []>} : vector<16x8xf32>, vector<8x256xf32>, vector<16x256xf32> -> vector<16x256xf32>
    %90 = arith.addf %85, %89 : vector<16x256xf32>
    %c0_92 = arith.constant 0 : index
    %c33_93 = arith.constant 33 : index
    %91 = vector.load %arg7[%c0_92, %c33_93] : memref<16x384xf32, #tpu.memory_space<vmem>>, vector<8x256xf32>
    %c7_94 = arith.constant 7 : index
    %c0_95 = arith.constant 0 : index
    %c0_96 = arith.constant 0 : index
    %92 = vector.load %arg4[%c7_94, %c0_95, %c0_96] : memref<9x16x8xf32, #tpu.memory_space<vmem>>, vector<1x16x8xf32>
    %93 = vector.shape_cast %92 : vector<1x16x8xf32> to vector<16x8xf32>
    %cst_97 = arith.constant dense<0.000000e+00> : vector<16x256xf32>
    %94 = tpu.matmul %93, %91, %cst_97 {dimension_numbers = #tpu.dot_dimension_numbers<[1], [0], [0], [1], [0, 0, 1, 1], [], []>} : vector<16x8xf32>, vector<8x256xf32>, vector<16x256xf32> -> vector<16x256xf32>
    %95 = arith.addf %90, %94 : vector<16x256xf32>
    %c0_98 = arith.constant 0 : index
    %c34_99 = arith.constant 34 : index
    %96 = vector.load %arg7[%c0_98, %c34_99] : memref<16x384xf32, #tpu.memory_space<vmem>>, vector<8x256xf32>
    %c8_100 = arith.constant 8 : index
    %c0_101 = arith.constant 0 : index
    %c0_102 = arith.constant 0 : index
    %97 = vector.load %arg4[%c8_100, %c0_101, %c0_102] : memref<9x16x8xf32, #tpu.memory_space<vmem>>, vector<1x16x8xf32>
    %98 = vector.shape_cast %97 : vector<1x16x8xf32> to vector<16x8xf32>
    %cst_103 = arith.constant dense<0.000000e+00> : vector<16x256xf32>
    %99 = tpu.matmul %98, %96, %cst_103 {dimension_numbers = #tpu.dot_dimension_numbers<[1], [0], [0], [1], [0, 0, 1, 1], [], []>} : vector<16x8xf32>, vector<8x256xf32>, vector<16x256xf32> -> vector<16x256xf32>
    %100 = arith.addf %95, %99 : vector<16x256xf32>
    %c0_104 = arith.constant 0 : index
    %c0_105 = arith.constant 0 : index
    %101 = vector.load %arg5[%c0_104, %c0_105] : memref<16x1xf32, #tpu.memory_space<vmem>>, vector<16x1xf32>
    %102 = vector.broadcast %101 : vector<16x1xf32> to vector<16x256xf32>
    %103 = arith.addf %100, %102 : vector<16x256xf32>
    %cst_106 = arith.constant 0.000000e+00 : f32
    %104 = vector.broadcast %cst_106 : f32 to vector<16x256xf32>
    %105 = arith.maximumf %103, %104 : vector<16x256xf32>
    %c0_107 = arith.constant 0 : index
    %c0_108 = arith.constant 0 : index
    %c0_109 = arith.constant 0 : index
    %106 = vector.load %arg6[%c0_107, %c0_108, %c0_109] : memref<1x16x256xf32, #tpu.memory_space<vmem>>, vector<1x16x256xf32>
    %107 = vector.shape_cast %106 : vector<1x16x256xf32> to vector<16x256xf32>
    %108 = vector.shape_cast %105 : vector<16x256xf32> to vector<1x16x256xf32>
    tpu.vector_store %arg6[%c0_107, %c0_108, %c0_109], %108 {strides = array<i32>} : memref<1x16x256xf32, #tpu.memory_space<vmem>>, vector<1x16x256xf32>,
    return
  }
  func.func @transform_0(%arg0: i32) -> (i32, i32, i32) {
    %c0_i32 = arith.constant 0 : i32
    %c0_i32_0 = arith.constant 0 : i32
    %c0_i32_1 = arith.constant 0 : i32
    return %arg0, %c0_i32, %c0_i32_0 : i32, i32, i32
  }
  func.func @transform_1(%arg0: i32) -> (i32, i32, i32) {
    %c0_i32 = arith.constant 0 : i32
    %c0_i32_0 = arith.constant 0 : i32
    %c0_i32_1 = arith.constant 0 : i32
    %c0_i32_2 = arith.constant 0 : i32
    return %c0_i32, %c0_i32_0, %c0_i32_1 : i32, i32, i32
  }
  func.func @transform_2(%arg0: i32) -> (i32, i32) {
    %c0_i32 = arith.constant 0 : i32
    %c0_i32_0 = arith.constant 0 : i32
    %c0_i32_1 = arith.constant 0 : i32
    return %c0_i32, %c0_i32_0 : i32, i32
  }
  func.func @transform_3(%arg0: i32) -> (i32, i32, i32) {
    %c0_i32 = arith.constant 0 : i32
    %c0_i32_0 = arith.constant 0 : i32
    %c0_i32_1 = arith.constant 0 : i32
    %c0_i32_2 = arith.constant 0 : i32
    return %c0_i32, %c0_i32_0, %c0_i32_1 : i32, i32, i32
  }
  func.func @transform_4(%arg0: i32) -> (i32, i32) {
    %c0_i32 = arith.constant 0 : i32
    %c0_i32_0 = arith.constant 0 : i32
    %c0_i32_1 = arith.constant 0 : i32
    return %c0_i32, %c0_i32_0 : i32, i32
  }
  func.func @transform_5(%arg0: i32) -> (i32, i32, i32) {
    %c0_i32 = arith.constant 0 : i32
    %c0_i32_0 = arith.constant 0 : i32
    %c0_i32_1 = arith.constant 0 : i32
    return %arg0, %c0_i32, %c0_i32_0 : i32, i32, i32
  }
}

</mosaic_0001>

<llo_original>
// kernel: _lambda_.1
$region0: #{_lambda_.1}
  #allocation0 [shape = 'u32[]', space=smem, size = 0x4, offset = 0x4, fixed_abs, tag = 'smem constant byte address 0x4 - core index']
  #allocation1 [shape = 'u32[144,128]{1,0:T(1,128)}', space=vmem, size = 0x12000, scoped, tag = 'internal scratch']
  #allocation2 [shape = 'f32[16,384]{1,0:T(8,128)}', space=vmem, size = 0x6000, scoped, tag = 'scratch operand']
  %s0 = inlined_call_operand.vmem [shape: f32[2,4,256], index: 0, kind: input, shape index: {}]
  %s1 = inlined_call_operand.hbm [shape: f32[9,8,4], index: 1, kind: input, shape index: {}]
  %s2 = inlined_call_operand.vmem [shape: f32[8,1], index: 2, kind: input, shape index: {}]
  %s3 = inlined_call_operand.vmem [shape: f32[9,16,8], index: 3, kind: input, shape index: {}]
  %s4 = inlined_call_operand.hbm [shape: f32[16,1], index: 4, kind: input, shape index: {}]
  %s5 = inlined_call_operand.vmem [shape: f32[2,16,256], index: 5, kind: output, shape index: {}]
  %s6 = sld [smem:[#allocation0]]
  $region61: #{_lambda_.1} parent=0
    _
  %s8 = ssub.s32 1, %s6
  %s9 = scalar_select 0, %s8, %s6
  $region1: #{_lambda_.1} parent=0
    #allocation3 [shape = 'u8[36864]{0}', space=vmem, size = 0x9000, scoped, tag = 'input window, operand 1, single buffered']
    #allocation4 [shape = 's32[2]{0}', space=sflag, size = 0x8, scoped, tag = 'scoped memory for _lambda_.1']
    #allocation5 [shape = 'u8[8192]{0}', space=vmem, size = 0x2000, scoped, tag = 'input window, operand 4, single buffered']
    #allocation6 [shape = 's32[1]{0}', space=sflag, size = 0x4, scoped, tag = 'scoped memory for _lambda_.1']
    %10 = vsyncpa [#allocation4], 0
    %11 = vsyncpa [#allocation6], 0
    loop: start=0, step=1, limit=4
    $region2: #{_lambda_.1} parent=1 // loop_pre_header
      _
    $region3: #{_lambda_.1} parent=1 // loop_header
      %s13 = sphi 0, %s17
      %p14 = scmp.ge.s32.totalorder %s13, 4
      %s23 = sphi 0, %s25
      %s26 = sphi 0, %s23
      %s27 = sphi 0, %s26
      %s43 = sphi 0, %s27
      %s47 = sphi 0, %s47
      %s49 = sphi 0, %s47
      %s50 = sphi 0, %s49
      %s64 = sphi 0, %s50
      %s68 = sphi 0, %s68
      %s70 = sphi 0, %s68
      %s71 = sphi 0, %s70
      %s85 = sphi 0, %s71
      %s89 = sphi 0, %s89
      %s91 = sphi 0, %s89
      %s92 = sphi 0, %s91
      %s106 = sphi 0, %s92
      %s110 = sphi 0, %s110
      %s112 = sphi 0, %s110
      %s113 = sphi 0, %s112
      %s127 = sphi 0, %s113
      %s133 = sphi 0, %s135
      %s136 = sphi 0, %s133
      %s137 = sphi 0, %s136
      %s153 = sphi 0, %s137
    $region4: #{_lambda_.1} parent=1 // loop_header_branch
      %16 = sbr.rel (%p14) target = $region8
    $region5: #{_lambda_.1} parent=1 // loop_body
      %s18 = ssub.s32 %s13, 1
      %s19 = ssub.s32 %s13, 2
      %s20 = sadd.s32 %s13, 1
      %s21 = ssub.s32 %s13, %s20
      %p22 = scmp.eq.s32.totalorder %s21, 0
      %s24 = sadd.s32 %s23, 1
      %s25 = scalar_select %p22, %s23, %s24
      %p28 = pneg %p22
      %p29 = scmp.eq.s32.totalorder %s13, 1
      %p30 = por %p28, %p29
      %p31 = scmp.ne.s32.totalorder %s23, %s26
      %p32 = scmp.eq.s32.totalorder %s13, 0
      %p33 = por %p31, %p32
      %p34 = scmp.ne.s32.totalorder %s23, %s26
      %p35 = scmp.eq.s32.totalorder %s18, 1
      %p36 = por %p34, %p35
      %p37 = scmp.ne.s32.totalorder %s26, %s27
      %p38 = scmp.eq.s32.totalorder %s18, 0
      %p39 = por %p37, %p38
      %p40 = scmp.ne.s32.totalorder %s26, %s27
      %p41 = scmp.eq.s32.totalorder %s19, 1
      %p42 = por %p40, %p41
      %p44 = scmp.ne.s32.totalorder %s27, %s43
      %p45 = scmp.eq.s32.totalorder %s19, 0
      %p46 = por %p44, %p45
      %s48 = sadd.s32 %s47, 1
      %p51 = scmp.eq.s32.totalorder %s13, 1
      %p52 = scmp.ne.s32.totalorder %s47, %s49
      %p53 = scmp.eq.s32.totalorder %s13, 0
      %p54 = por %p52, %p53
      %p55 = scmp.ne.s32.totalorder %s47, %s49
      %p56 = scmp.eq.s32.totalorder %s18, 1
      %p57 = por %p55, %p56
      %p58 = scmp.ne.s32.totalorder %s49, %s50
      %p59 = scmp.eq.s32.totalorder %s18, 0
      %p60 = por %p58, %p59
      %p61 = scmp.ne.s32.totalorder %s49, %s50
      %p62 = scmp.eq.s32.totalorder %s19, 1
      %p63 = por %p61, %p62
      %p65 = scmp.ne.s32.totalorder %s50, %s64
      %p66 = scmp.eq.s32.totalorder %s19, 0
      %p67 = por %p65, %p66
      %s69 = sadd.s32 %s68, 1
      %p72 = scmp.eq.s32.totalorder %s13, 1
      %p73 = scmp.ne.s32.totalorder %s68, %s70
      %p74 = scmp.eq.s32.totalorder %s13, 0
      %p75 = por %p73, %p74
      %p76 = scmp.ne.s32.totalorder %s68, %s70
      %p77 = scmp.eq.s32.totalorder %s18, 1
      %p78 = por %p76, %p77
      %p79 = scmp.ne.s32.totalorder %s70, %s71
      %p80 = scmp.eq.s32.totalorder %s18, 0
      %p81 = por %p79, %p80
      %p82 = scmp.ne.s32.totalorder %s70, %s71
      %p83 = scmp.eq.s32.totalorder %s19, 1
      %p84 = por %p82, %p83
      %p86 = scmp.ne.s32.totalorder %s71, %s85
      %p87 = scmp.eq.s32.totalorder %s19, 0
      %p88 = por %p86, %p87
      %s90 = sadd.s32 %s89, 1
      %p93 = scmp.eq.s32.totalorder %s13, 1
      %p94 = scmp.ne.s32.totalorder %s89, %s91
      %p95 = scmp.eq.s32.totalorder %s13, 0
      %p96 = por %p94, %p95
      %p97 = scmp.ne.s32.totalorder %s89, %s91
      %p98 = scmp.eq.s32.totalorder %s18, 1
      %p99 = por %p97, %p98
      %p100 = scmp.ne.s32.totalorder %s91, %s92
      %p101 = scmp.eq.s32.totalorder %s18, 0
      %p102 = por %p100, %p101
      %p103 = scmp.ne.s32.totalorder %s91, %s92
      %p104 = scmp.eq.s32.totalorder %s19, 1
      %p105 = por %p103, %p104
      %p107 = scmp.ne.s32.totalorder %s92, %s106
      %p108 = scmp.eq.s32.totalorder %s19, 0
      %p109 = por %p107, %p108
      %s111 = sadd.s32 %s110, 1
      %p114 = scmp.eq.s32.totalorder %s13, 1
      %p115 = scmp.ne.s32.totalorder %s110, %s112
      %p116 = scmp.eq.s32.totalorder %s13, 0
      %p117 = por %p115, %p116
      %p118 = scmp.ne.s32.totalorder %s110, %s112
      %p119 = scmp.eq.s32.totalorder %s18, 1
      %p120 = por %p118, %p119
      %p121 = scmp.ne.s32.totalorder %s112, %s113
      %p122 = scmp.eq.s32.totalorder %s18, 0
      %p123 = por %p121, %p122
      %p124 = scmp.ne.s32.totalorder %s112, %s113
      %p125 = scmp.eq.s32.totalorder %s19, 1
      %p126 = por %p124, %p125
      %p128 = scmp.ne.s32.totalorder %s113, %s127
      %p129 = scmp.eq.s32.totalorder %s19, 0
      %p130 = por %p128, %p129
      %s131 = ssub.s32 %s13, %s20
      %p132 = scmp.eq.s32.totalorder %s131, 0
      %s134 = sadd.s32 %s133, 1
      %s135 = scalar_select %p132, %s133, %s134
      %p138 = pneg %p132
      %p139 = scmp.eq.s32.totalorder %s13, 1
      %p140 = por %p138, %p139
      %p141 = scmp.ne.s32.totalorder %s133, %s136
      %p142 = scmp.eq.s32.totalorder %s13, 0
      %p143 = por %p141, %p142
      %p144 = scmp.ne.s32.totalorder %s133, %s136
      %p145 = scmp.eq.s32.totalorder %s18, 1
      %p146 = por %p144, %p145
      %p147 = scmp.ne.s32.totalorder %s136, %s137
      %p148 = scmp.eq.s32.totalorder %s18, 0
      %p149 = por %p147, %p148
      %p150 = scmp.ne.s32.totalorder %s136, %s137
      %p151 = scmp.eq.s32.totalorder %s19, 1
      %p152 = por %p150, %p151
      %p154 = scmp.ne.s32.totalorder %s137, %s153
      %p155 = scmp.eq.s32.totalorder %s19, 0
      %p156 = por %p154, %p155
      %p157 = scmp.le.s32.totalorder 1, %s13
      %p158 = scmp.lt.s32.totalorder %s13, 3
      %p159 = pnand %p157, %p158
      %p160 = pneg %p159
      // Predicated region
      $region9: #{_lambda_.1} parent=5 // pred_check
        _
      $region10: #{_lambda_.1} parent=5 // pred_check_branch
        %162 = sbr.rel (%p159) target = $region12
      $region11: #{_lambda_.1} parent=5 // pred_region
        %s163 = ssub.s32 %s13, 1
        // Predicated region
        $region13: #{_lambda_.1} parent=11 // pred_check
          %p164 = pneg %p60
        $region14: #{_lambda_.1} parent=11 // pred_check_branch
          %166 = sbr.rel (%p164) target = $region16
        $region15: #{_lambda_.1} parent=11 // pred_region
          %s168 = ssub.s32 1152, 1152
          %169 = vsyncadd [#allocation4], %s168
          %s170 = sshll.u32 [#allocation3], 4
          %s171 = int_to_ptr.vmem [resolvable:$true] %s170
          %176 = dma.hbm_to_vmem [thread:$0]  %s1, 1152, %s171, [#allocation4], 128, 128, 8
        $region16: #{_lambda_.1} parent=11 // pred_fallthru
          _
        // Predicated region
        $region17: #{_lambda_.1} parent=11 // pred_check
          %p177 = pneg %p81
        $region18: #{_lambda_.1} parent=11 // pred_check_branch
          %179 = sbr.rel (%p177) target = $region20
        $region19: #{_lambda_.1} parent=11 // pred_region
          _
        $region20: #{_lambda_.1} parent=11 // pred_fallthru
          _
        // Predicated region
        $region21: #{_lambda_.1} parent=11 // pred_check
          %p180 = pneg %p102
        $region22: #{_lambda_.1} parent=11 // pred_check_branch
          %182 = sbr.rel (%p180) target = $region24
        $region23: #{_lambda_.1} parent=11 // pred_region
          _
        $region24: #{_lambda_.1} parent=11 // pred_fallthru
          _
        // Predicated region
        $region25: #{_lambda_.1} parent=11 // pred_check
          %p183 = pneg %p123
        $region26: #{_lambda_.1} parent=11 // pred_check_branch
          %185 = sbr.rel (%p183) target = $region28
        $region27: #{_lambda_.1} parent=11 // pred_region
          %s187 = ssub.s32 256, 256
          %188 = vsyncadd [#allocation6], %s187
          %s189 = sshll.u32 [#allocation5], 4
          %s190 = int_to_ptr.vmem [resolvable:$true] %s189
          %195 = dma.hbm_to_vmem [thread:$0]  %s4, 256, %s190, [#allocation6], 128, 128, 8
        $region28: #{_lambda_.1} parent=11 // pred_fallthru
          _
      $region12: #{_lambda_.1} parent=5 // pred_fallthru
        _
      %p196 = scmp.lt.s32.totalorder %s13, 2
      // Predicated region
      $region29: #{_lambda_.1} parent=5 // pred_check
        %p197 = pneg %p196
      $region30: #{_lambda_.1} parent=5 // pred_check_branch
        %199 = sbr.rel (%p197) target = $region32
      $region31: #{_lambda_.1} parent=5 // pred_region
        // Predicated region
        $region33: #{_lambda_.1} parent=31 // pred_check
          %p200 = pneg %p33
        $region34: #{_lambda_.1} parent=31 // pred_check_branch
          %202 = sbr.rel (%p200) target = $region36
        $region35: #{_lambda_.1} parent=31 // pred_region
          %p203 = scmp.lt.s32.totalorder %s13, 1
          %s204 = scalar_select %p203, %s13, 1
          %s205 = smul.addr %s204, 2
          %s206 = smul.addr %s205, 4
          %s207 = scalar_lea.vmem %s0, %s206
        $region36: #{_lambda_.1} parent=31 // pred_fallthru
          _
      $region32: #{_lambda_.1} parent=5 // pred_fallthru
        _
      %p208 = scmp.le.s32.totalorder 1, %s13
      %p209 = scmp.lt.s32.totalorder %s13, 3
      %p210 = pnand %p208, %p209
      %p211 = pneg %p210
      // Predicated region
      $region37: #{_lambda_.1} parent=5 // pred_check
        _
      $region38: #{_lambda_.1} parent=5 // pred_check_branch
        %213 = sbr.rel (%p210) target = $region40
      $region39: #{_lambda_.1} parent=5 // pred_region
        %s214 = ssub.s32 %s13, 1
        // Predicated region
        $region41: #{_lambda_.1} parent=39 // pred_check
          %p215 = pneg %p60
        $region42: #{_lambda_.1} parent=39 // pred_check_branch
          %217 = sbr.rel (%p215) target = $region44
        $region43: #{_lambda_.1} parent=39 // pred_region
          %218 = dma.done [#allocation4], 1152
        $region44: #{_lambda_.1} parent=39 // pred_fallthru
          _
        // Predicated region
        $region45: #{_lambda_.1} parent=39 // pred_check
          %p219 = pneg %p123
        $region46: #{_lambda_.1} parent=39 // pred_check_branch
          %221 = sbr.rel (%p219) target = $region48
        $region47: #{_lambda_.1} parent=39 // pred_region
          %222 = dma.done [#allocation6], 256
        $region48: #{_lambda_.1} parent=39 // pred_fallthru
          _
        %p223 = scmp.lt.s32.totalorder %s18, 1
        %s224 = scalar_select %p223, %s18, 1
        %s225 = smul.addr %s224, 2
        %s226 = smul.addr %s225, 4
        %s227 = scalar_lea.vmem %s0, %s226
        %p228 = pneg %p39
        %p229 = pneg %p36
        %p230 = pneg %p60
        %p231 = pneg %p57
        %p232 = pneg %p81
        %p233 = pneg %p78
        %p234 = pneg %p102
        %p235 = pneg %p99
        %p236 = pneg %p123
        %p237 = pneg %p120
        %p238 = pneg %p149
        %p239 = pneg %p146
        %p240 = scmp.lt.s32.totalorder %s18, 1
        %s241 = scalar_select %p240, %s18, 1
        %s242 = smul.addr %s241, 4
        %s243 = smul.addr %s242, 8
        %s244 = scalar_lea.vmem %s5, %s243
        %p245 = scmp.lt.s32.totalorder %s18, 1
        %s246 = scalar_select %p245, %s18, 1
        %s247 = smul.addr %s246, 2
        %s248 = smul.addr %s247, 4
        %s249 = scalar_lea.vmem %s0, %s248
        %p250 = scmp.lt.s32.totalorder %s18, 1
        %s251 = scalar_select %p250, %s18, 1
        %s252 = smul.addr %s251, 4
        %s253 = smul.addr %s252, 8
        %s254 = scalar_lea.vmem %s5, %s253
        %v255 = vld [vmem:[%s249] sm:$0xff]
        %v257 = vcombine.high %v255, %v255
        %259 = vst [vmem:[#allocation2] sm:$0xf] %v255
        %260 = vst [vmem:[#allocation2 + $0x8] sm:$0xf] %v257
        %v261 = vld [vmem:[#allocation2] sm:$0xf]
        %v262 = vld [vmem:[#allocation2 + $0x8] sm:$0xf]
        %v263 = vld [vmem:[#allocation3] sm:$0xff]
        %v264 = vld [vmem:[#allocation2 + $0x10] sm:$0xf]
        %s265 = scalar_lea.vmem [#allocation3], 8
        %v266 = vld [vmem:[%s265] sm:$0xff]
        %270 = vrot.lane.b32.xlu0 %v261, 127
        %v271 = vpop.permute.xlu0 %270
        %272 = vrot.lane.b32.xlu0 %v262, 127
        %v273 = vpop.permute.xlu0 %272
        %274 = vrot.lane.b32.xlu0 %v264, 127
        %v275 = vpop.permute.xlu0 %274
        %vm276 = vcmask 1039360
        %v277 = vsel %vm276, %v271, %v273
        %v278 = vsel %vm276, %v273, %v275
        %vm279 = vcmask 31744
        %v281 = vsel %vm279, %v266, 0
        %vm283 = vcmask 1043456
        %v284 = vsel %vm283, %v277, 0
        %v286 = vsel %vm283, %v278, 0
        %288 = vmatprep.subr.mxu0 %v286
        %289 = vmatpush1.msra.mxu0 %v284
        %290 = vmatprep.subr.mxu0 0.0
        %291 = vmatpush1.msra.mxu0 0.0
        %292 = vmatprep.subr.mxu0 0.0
        %293 = vmatpush1.msra.mxu0 0.0
        %294 = vmatprep.subr.mxu0 0.0
        %295 = vmatpush1.msra.mxu0 0.0
        %296 = vmatprep.subr.mxu0 0.0
        %297 = vmatpush1.msra.mxu0 0.0
        %298 = vmatprep.subr.mxu0 0.0
        %299 = vmatpush1.msra.mxu0 0.0
        %300 = vmatprep.subr.mxu0 0.0
        %301 = vmatpush1.msra.mxu0 0.0
        %302 = vmatprep.subr.mxu0 0.0
        %303 = vmatpush1.msra.mxu0 0.0
        %304 = vmatprep.subr.mxu0 0.0
        %305 = vmatpush1.msra.mxu0 0.0
        %306 = vmatprep.subr.mxu0 0.0
        %307 = vmatpush1.msra.mxu0 0.0
        %308 = vmatprep.subr.mxu0 0.0
        %309 = vmatpush1.msra.mxu0 0.0
        %310 = vmatprep.subr.mxu0 0.0
        %311 = vmatpush1.msra.mxu0 0.0
        %312 = vmatprep.subr.mxu0 0.0
        %313 = vmatpush1.msra.mxu0 0.0
        %314 = vmatprep.subr.mxu0 0.0
        %315 = vmatpush1.msra.mxu0 0.0
        %316 = vmatprep.subr.mxu0 0.0
        %317 = vmatpush1.msra.mxu0 0.0
        %318 = vmatprep.subr.mxu0 0.0
        %319 = vmatpush1.msra.mxu0 0.0
        %320 = vmatprep.subr.mxu0 0.0
        %321 = vmatpush1.msra.mxu0 0.0
        %322 = vmatprep.subr.mxu0 0.0
        %323 = vmatpush1.msra.mxu0 0.0
        %324 = vmatprep.subr.mxu0 0.0
        %325 = vmatpush1.msra.mxu0 0.0
        %326 = vmatprep.subr.mxu0 0.0
        %327 = vmatpush1.msra.mxu0 0.0
        %328 = vmatprep.subr.mxu0 0.0
        %329 = vmatpush1.msra.mxu0 0.0
        %330 = vmatprep.subr.mxu0 0.0
        %331 = vmatpush1.msra.mxu0 0.0
        %332 = vmatprep.subr.mxu0 0.0
        %333 = vmatpush1.msra.mxu0 0.0
        %334 = vmatprep.subr.mxu0 0.0
        %335 = vmatpush1.msra.mxu0 0.0
        %336 = vmatprep.subr.mxu0 0.0
        %337 = vmatpush1.msra.mxu0 0.0
        %338 = vmatprep.subr.mxu0 0.0
        %339 = vmatpush1.msra.mxu0 0.0
        %340 = vmatprep.subr.mxu0 0.0
        %341 = vmatpush1.msra.mxu0 0.0
        %342 = vmatprep.subr.mxu0 0.0
        %343 = vmatpush1.msra.mxu0 0.0
        %344 = vmatprep.subr.mxu0 0.0
        %345 = vmatpush1.msra.mxu0 0.0
        %346 = vmatprep.subr.mxu0 0.0
        %347 = vmatpush1.msra.mxu0 0.0
        %348 = vmatprep.subr.mxu0 0.0
        %349 = vmatpush1.msra.mxu0 0.0
        %350 = vmatprep.subr.mxu0 0.0
        %351 = vmatpush1.msra.mxu0 0.0
        %352 = vmatprep.mubr.f32.mxu0 0.0
        %353 = vmatmul.mubr.f32.gmra.mrb[0].mxu0 %v281
        %v354 = vpop.f32.mrb[0].mxu0
        %v355 = vadd.f32 0.0, %v354
        %v356 = vpop.f32.mrb[0].mxu0
        %v357 = vadd.f32 0.0, %v356
        %358 = vdwg.mxu0
        %v360 = vsel %vm279, %v263, 0
        %v362 = vsel %vm283, %v261, 0
        %v364 = vsel %vm283, %v262, 0
        %366 = vmatprep.subr.mxu0 %v364
        %367 = vmatpush1.msra.mxu0 %v362
        %368 = vmatprep.subr.mxu0 0.0
        %369 = vmatpush1.msra.mxu0 0.0
        %370 = vmatprep.subr.mxu0 0.0
        %371 = vmatpush1.msra.mxu0 0.0
        %372 = vmatprep.subr.mxu0 0.0
        %373 = vmatpush1.msra.mxu0 0.0
        %374 = vmatprep.subr.mxu0 0.0
        %375 = vmatpush1.msra.mxu0 0.0
        %376 = vmatprep.subr.mxu0 0.0
        %377 = vmatpush1.msra.mxu0 0.0
        %378 = vmatprep.subr.mxu0 0.0
        %379 = vmatpush1.msra.mxu0 0.0
        %380 = vmatprep.subr.mxu0 0.0
        %381 = vmatpush1.msra.mxu0 0.0
        %382 = vmatprep.subr.mxu0 0.0
        %383 = vmatpush1.msra.mxu0 0.0
        %384 = vmatprep.subr.mxu0 0.0
        %385 = vmatpush1.msra.mxu0 0.0
        %386 = vmatprep.subr.mxu0 0.0
        %387 = vmatpush1.msra.mxu0 0.0
        %388 = vmatprep.subr.mxu0 0.0
        %389 = vmatpush1.msra.mxu0 0.0
        %390 = vmatprep.subr.mxu0 0.0
        %391 = vmatpush1.msra.mxu0 0.0
        %392 = vmatprep.subr.mxu0 0.0
        %393 = vmatpush1.msra.mxu0 0.0
        %394 = vmatprep.subr.mxu0 0.0
        %395 = vmatpush1.msra.mxu0 0.0
        %396 = vmatprep.subr.mxu0 0.0
        %397 = vmatpush1.msra.mxu0 0.0
        %398 = vmatprep.subr.mxu0 0.0
        %399 = vmatpush1.msra.mxu0 0.0
        %400 = vmatprep.subr.mxu0 0.0
        %401 = vmatpush1.msra.mxu0 0.0
        %402 = vmatprep.subr.mxu0 0.0
        %403 = vmatpush1.msra.mxu0 0.0
        %404 = vmatprep.subr.mxu0 0.0
        %405 = vmatpush1.msra.mxu0 0.0
        %406 = vmatprep.subr.mxu0 0.0
        %407 = vmatpush1.msra.mxu0 0.0
        %408 = vmatprep.subr.mxu0 0.0
        %409 = vmatpush1.msra.mxu0 0.0
        %410 = vmatprep.subr.mxu0 0.0
        %411 = vmatpush1.msra.mxu0 0.0
        %412 = vmatprep.subr.mxu0 0.0
        %413 = vmatpush1.msra.mxu0 0.0
        %414 = vmatprep.subr.mxu0 0.0
        %415 = vmatpush1.msra.mxu0 0.0
        %416 = vmatprep.subr.mxu0 0.0
        %417 = vmatpush1.msra.mxu0 0.0
        %418 = vmatprep.subr.mxu0 0.0
        %419 = vmatpush1.msra.mxu0 0.0
        %420 = vmatprep.subr.mxu0 0.0
        %421 = vmatpush1.msra.mxu0 0.0
        %422 = vmatprep.subr.mxu0 0.0
        %423 = vmatpush1.msra.mxu0 0.0
        %424 = vmatprep.subr.mxu0 0.0
        %425 = vmatpush1.msra.mxu0 0.0
        %426 = vmatprep.subr.mxu0 0.0
        %427 = vmatpush1.msra.mxu0 0.0
        %428 = vmatprep.subr.mxu0 0.0
        %429 = vmatpush1.msra.mxu0 0.0
        %430 = vmatprep.mubr.f32.mxu0 0.0
        %431 = vmatmul.mubr.f32.gmra.mrb[0].mxu0 %v360
        %v432 = vpop.f32.mrb[0].mxu0
        %v433 = vadd.f32 %v355, %v432
        %v434 = vpop.f32.mrb[0].mxu0
        %v435 = vadd.f32 %v357, %v434
        %436 = vdwg.mxu0
        %s437 = scalar_lea.vmem [#allocation3], 16
        %v438 = vld [vmem:[%s437] sm:$0xff]
        %439 = vrot.lane.b32.xlu0 %v261, 126
        %v440 = vpop.permute.xlu0 %439
        %441 = vrot.lane.b32.xlu0 %v262, 126
        %v442 = vpop.permute.xlu0 %441
        %443 = vrot.lane.b32.xlu0 %v264, 126
        %v444 = vpop.permute.xlu0 %443
        %vm445 = vcmask 1031168
        %v446 = vsel %vm445, %v440, %v442
        %v447 = vsel %vm445, %v442, %v444
        %v449 = vsel %vm279, %v438, 0
        %v451 = vsel %vm283, %v446, 0
        %v453 = vsel %vm283, %v447, 0
        %455 = vmatprep.subr.mxu0 %v453
        %456 = vmatpush1.msra.mxu0 %v451
        %457 = vmatprep.subr.mxu0 0.0
        %458 = vmatpush1.msra.mxu0 0.0
        %459 = vmatprep.subr.mxu0 0.0
        %460 = vmatpush1.msra.mxu0 0.0
        %461 = vmatprep.subr.mxu0 0.0
        %462 = vmatpush1.msra.mxu0 0.0
        %463 = vmatprep.subr.mxu0 0.0
        %464 = vmatpush1.msra.mxu0 0.0
        %465 = vmatprep.subr.mxu0 0.0
        %466 = vmatpush1.msra.mxu0 0.0
        %467 = vmatprep.subr.mxu0 0.0
        %468 = vmatpush1.msra.mxu0 0.0
        %469 = vmatprep.subr.mxu0 0.0
        %470 = vmatpush1.msra.mxu0 0.0
        %471 = vmatprep.subr.mxu0 0.0
        %472 = vmatpush1.msra.mxu0 0.0
        %473 = vmatprep.subr.mxu0 0.0
        %474 = vmatpush1.msra.mxu0 0.0
        %475 = vmatprep.subr.mxu0 0.0
        %476 = vmatpush1.msra.mxu0 0.0
        %477 = vmatprep.subr.mxu0 0.0
        %478 = vmatpush1.msra.mxu0 0.0
        %479 = vmatprep.subr.mxu0 0.0
        %480 = vmatpush1.msra.mxu0 0.0
        %481 = vmatprep.subr.mxu0 0.0
        %482 = vmatpush1.msra.mxu0 0.0
        %483 = vmatprep.subr.mxu0 0.0
        %484 = vmatpush1.msra.mxu0 0.0
        %485 = vmatprep.subr.mxu0 0.0
        %486 = vmatpush1.msra.mxu0 0.0
        %487 = vmatprep.subr.mxu0 0.0
        %488 = vmatpush1.msra.mxu0 0.0
        %489 = vmatprep.subr.mxu0 0.0
        %490 = vmatpush1.msra.mxu0 0.0
        %491 = vmatprep.subr.mxu0 0.0
        %492 = vmatpush1.msra.mxu0 0.0
        %493 = vmatprep.subr.mxu0 0.0
        %494 = vmatpush1.msra.mxu0 0.0
        %495 = vmatprep.subr.mxu0 0.0
        %496 = vmatpush1.msra.mxu0 0.0
        %497 = vmatprep.subr.mxu0 0.0
        %498 = vmatpush1.msra.mxu0 0.0
        %499 = vmatprep.subr.mxu0 0.0
        %500 = vmatpush1.msra.mxu0 0.0
        %501 = vmatprep.subr.mxu0 0.0
        %502 = vmatpush1.msra.mxu0 0.0
        %503 = vmatprep.subr.mxu0 0.0
        %504 = vmatpush1.msra.mxu0 0.0
        %505 = vmatprep.subr.mxu0 0.0
        %506 = vmatpush1.msra.mxu0 0.0
        %507 = vmatprep.subr.mxu0 0.0
        %508 = vmatpush1.msra.mxu0 0.0
        %509 = vmatprep.subr.mxu0 0.0
        %510 = vmatpush1.msra.mxu0 0.0
        %511 = vmatprep.subr.mxu0 0.0
        %512 = vmatpush1.msra.mxu0 0.0
        %513 = vmatprep.subr.mxu0 0.0
        %514 = vmatpush1.msra.mxu0 0.0
        %515 = vmatprep.subr.mxu0 0.0
        %516 = vmatpush1.msra.mxu0 0.0
        %517 = vmatprep.subr.mxu0 0.0
        %518 = vmatpush1.msra.mxu0 0.0
        %519 = vmatprep.mubr.f32.mxu0 0.0
        %520 = vmatmul.mubr.f32.gmra.mrb[0].mxu0 %v449
        %v521 = vpop.f32.mrb[0].mxu0
        %v522 = vadd.f32 0.0, %v521
        %v523 = vpop.f32.mrb[0].mxu0
        %v524 = vadd.f32 0.0, %v523
        %525 = vdwg.mxu0
        %v526 = vadd.f32 %v433, %v522
        %v527 = vadd.f32 %v435, %v524
        %s528 = scalar_lea.vmem [#allocation3], 24
        %v529 = vld [vmem:[%s528] sm:$0xff]
        %530 = vrot.lane.b32.xlu0 %v261, 112
        %v531 = vpop.permute.xlu0 %530
        %532 = vrot.lane.b32.xlu0 %v262, 112
        %v533 = vpop.permute.xlu0 %532
        %534 = vrot.lane.b32.xlu0 %v264, 112
        %v535 = vpop.permute.xlu0 %534
        %vm536 = vcmask 916480
        %v537 = vsel %vm536, %v531, %v533
        %v538 = vsel %vm536, %v533, %v535
        %v540 = vsel %vm279, %v529, 0
        %v542 = vsel %vm283, %v537, 0
        %v544 = vsel %vm283, %v538, 0
        %546 = vmatprep.subr.mxu0 %v544
        %547 = vmatpush1.msra.mxu0 %v542
        %548 = vmatprep.subr.mxu0 0.0
        %549 = vmatpush1.msra.mxu0 0.0
        %550 = vmatprep.subr.mxu0 0.0
        %551 = vmatpush1.msra.mxu0 0.0
        %552 = vmatprep.subr.mxu0 0.0
        %553 = vmatpush1.msra.mxu0 0.0
        %554 = vmatprep.subr.mxu0 0.0
        %555 = vmatpush1.msra.mxu0 0.0
        %556 = vmatprep.subr.mxu0 0.0
        %557 = vmatpush1.msra.mxu0 0.0
        %558 = vmatprep.subr.mxu0 0.0
        %559 = vmatpush1.msra.mxu0 0.0
        %560 = vmatprep.subr.mxu0 0.0
        %561 = vmatpush1.msra.mxu0 0.0
        %562 = vmatprep.subr.mxu0 0.0
        %563 = vmatpush1.msra.mxu0 0.0
        %564 = vmatprep.subr.mxu0 0.0
        %565 = vmatpush1.msra.mxu0 0.0
        %566 = vmatprep.subr.mxu0 0.0
        %567 = vmatpush1.msra.mxu0 0.0
        %568 = vmatprep.subr.mxu0 0.0
        %569 = vmatpush1.msra.mxu0 0.0
        %570 = vmatprep.subr.mxu0 0.0
        %571 = vmatpush1.msra.mxu0 0.0
        %572 = vmatprep.subr.mxu0 0.0
        %573 = vmatpush1.msra.mxu0 0.0
        %574 = vmatprep.subr.mxu0 0.0
        %575 = vmatpush1.msra.mxu0 0.0
        %576 = vmatprep.subr.mxu0 0.0
        %577 = vmatpush1.msra.mxu0 0.0
        %578 = vmatprep.subr.mxu0 0.0
        %579 = vmatpush1.msra.mxu0 0.0
        %580 = vmatprep.subr.mxu0 0.0
        %581 = vmatpush1.msra.mxu0 0.0
        %582 = vmatprep.subr.mxu0 0.0
        %583 = vmatpush1.msra.mxu0 0.0
        %584 = vmatprep.subr.mxu0 0.0
        %585 = vmatpush1.msra.mxu0 0.0
        %586 = vmatprep.subr.mxu0 0.0
        %587 = vmatpush1.msra.mxu0 0.0
        %588 = vmatprep.subr.mxu0 0.0
        %589 = vmatpush1.msra.mxu0 0.0
        %590 = vmatprep.subr.mxu0 0.0
        %591 = vmatpush1.msra.mxu0 0.0
        %592 = vmatprep.subr.mxu0 0.0
        %593 = vmatpush1.msra.mxu0 0.0
        %594 = vmatprep.subr.mxu0 0.0
        %595 = vmatpush1.msra.mxu0 0.0
        %596 = vmatprep.subr.mxu0 0.0
        %597 = vmatpush1.msra.mxu0 0.0
        %598 = vmatprep.subr.mxu0 0.0
        %599 = vmatpush1.msra.mxu0 0.0
        %600 = vmatprep.subr.mxu0 0.0
        %601 = vmatpush1.msra.mxu0 0.0
        %602 = vmatprep.subr.mxu0 0.0
        %603 = vmatpush1.msra.mxu0 0.0
        %604 = vmatprep.subr.mxu0 0.0
        %605 = vmatpush1.msra.mxu0 0.0
        %606 = vmatprep.subr.mxu0 0.0
        %607 = vmatpush1.msra.mxu0 0.0
        %608 = vmatprep.subr.mxu0 0.0
        %609 = vmatpush1.msra.mxu0 0.0
        %610 = vmatprep.mubr.f32.mxu0 0.0
        %611 = vmatmul.mubr.f32.gmra.mrb[0].mxu0 %v540
        %v612 = vpop.f32.mrb[0].mxu0
        %v613 = vadd.f32 0.0, %v612
        %v614 = vpop.f32.mrb[0].mxu0
        %v615 = vadd.f32 0.0, %v614
        %616 = vdwg.mxu0
        %v617 = vadd.f32 %v526, %v613
        %v618 = vadd.f32 %v527, %v615
        %s619 = scalar_lea.vmem [#allocation3], 32
        %v620 = vld [vmem:[%s619] sm:$0xff]
        %621 = vrot.lane.b32.xlu0 %v261, 111
        %v622 = vpop.permute.xlu0 %621
        %623 = vrot.lane.b32.xlu0 %v262, 111
        %v624 = vpop.permute.xlu0 %623
        %625 = vrot.lane.b32.xlu0 %v264, 111
        %v626 = vpop.permute.xlu0 %625
        %vm627 = vcmask 908288
        %v628 = vsel %vm627, %v622, %v624
        %v629 = vsel %vm627, %v624, %v626
        %v631 = vsel %vm279, %v620, 0
        %v633 = vsel %vm283, %v628, 0
        %v635 = vsel %vm283, %v629, 0
        %637 = vmatprep.subr.mxu0 %v635
        %638 = vmatpush1.msra.mxu0 %v633
        %639 = vmatprep.subr.mxu0 0.0
        %640 = vmatpush1.msra.mxu0 0.0
        %641 = vmatprep.subr.mxu0 0.0
        %642 = vmatpush1.msra.mxu0 0.0
        %643 = vmatprep.subr.mxu0 0.0
        %644 = vmatpush1.msra.mxu0 0.0
        %645 = vmatprep.subr.mxu0 0.0
        %646 = vmatpush1.msra.mxu0 0.0
        %647 = vmatprep.subr.mxu0 0.0
        %648 = vmatpush1.msra.mxu0 0.0
        %649 = vmatprep.subr.mxu0 0.0
        %650 = vmatpush1.msra.mxu0 0.0
        %651 = vmatprep.subr.mxu0 0.0
        %652 = vmatpush1.msra.mxu0 0.0
        %653 = vmatprep.subr.mxu0 0.0
        %654 = vmatpush1.msra.mxu0 0.0
        %655 = vmatprep.subr.mxu0 0.0
        %656 = vmatpush1.msra.mxu0 0.0
        %657 = vmatprep.subr.mxu0 0.0
        %658 = vmatpush1.msra.mxu0 0.0
        %659 = vmatprep.subr.mxu0 0.0
        %660 = vmatpush1.msra.mxu0 0.0
        %661 = vmatprep.subr.mxu0 0.0
        %662 = vmatpush1.msra.mxu0 0.0
        %663 = vmatprep.subr.mxu0 0.0
        %664 = vmatpush1.msra.mxu0 0.0
        %665 = vmatprep.subr.mxu0 0.0
        %666 = vmatpush1.msra.mxu0 0.0
        %667 = vmatprep.subr.mxu0 0.0
        %668 = vmatpush1.msra.mxu0 0.0
        %669 = vmatprep.subr.mxu0 0.0
        %670 = vmatpush1.msra.mxu0 0.0
        %671 = vmatprep.subr.mxu0 0.0
        %672 = vmatpush1.msra.mxu0 0.0
        %673 = vmatprep.subr.mxu0 0.0
        %674 = vmatpush1.msra.mxu0 0.0
        %675 = vmatprep.subr.mxu0 0.0
        %676 = vmatpush1.msra.mxu0 0.0
        %677 = vmatprep.subr.mxu0 0.0
        %678 = vmatpush1.msra.mxu0 0.0
        %679 = vmatprep.subr.mxu0 0.0
        %680 = vmatpush1.msra.mxu0 0.0
        %681 = vmatprep.subr.mxu0 0.0
        %682 = vmatpush1.msra.mxu0 0.0
        %683 = vmatprep.subr.mxu0 0.0
        %684 = vmatpush1.msra.mxu0 0.0
        %685 = vmatprep.subr.mxu0 0.0
        %686 = vmatpush1.msra.mxu0 0.0
        %687 = vmatprep.subr.mxu0 0.0
        %688 = vmatpush1.msra.mxu0 0.0
        %689 = vmatprep.subr.mxu0 0.0
        %690 = vmatpush1.msra.mxu0 0.0
        %691 = vmatprep.subr.mxu0 0.0
        %692 = vmatpush1.msra.mxu0 0.0
        %693 = vmatprep.subr.mxu0 0.0
        %694 = vmatpush1.msra.mxu0 0.0
        %695 = vmatprep.subr.mxu0 0.0
        %696 = vmatpush1.msra.mxu0 0.0
        %697 = vmatprep.subr.mxu0 0.0
        %698 = vmatpush1.msra.mxu0 0.0
        %699 = vmatprep.subr.mxu0 0.0
        %700 = vmatpush1.msra.mxu0 0.0
        %701 = vmatprep.mubr.f32.mxu0 0.0
        %702 = vmatmul.mubr.f32.gmra.mrb[0].mxu0 %v631
        %v703 = vpop.f32.mrb[0].mxu0
        %v704 = vadd.f32 0.0, %v703
        %v705 = vpop.f32.mrb[0].mxu0
        %v706 = vadd.f32 0.0, %v705
        %707 = vdwg.mxu0
        %v708 = vadd.f32 %v617, %v704
        %v709 = vadd.f32 %v618, %v706
        %s710 = scalar_lea.vmem [#allocation3], 40
        %v711 = vld [vmem:[%s710] sm:$0xff]
        %712 = vrot.lane.b32.xlu0 %v261, 110
        %v713 = vpop.permute.xlu0 %712
        %714 = vrot.lane.b32.xlu0 %v262, 110
        %v715 = vpop.permute.xlu0 %714
        %716 = vrot.lane.b32.xlu0 %v264, 110
        %v717 = vpop.permute.xlu0 %716
        %vm718 = vcmask 900096
        %v719 = vsel %vm718, %v713, %v715
        %v720 = vsel %vm718, %v715, %v717
        %v722 = vsel %vm279, %v711, 0
        %v724 = vsel %vm283, %v719, 0
        %v726 = vsel %vm283, %v720, 0
        %728 = vmatprep.subr.mxu0 %v726
        %729 = vmatpush1.msra.mxu0 %v724
        %730 = vmatprep.subr.mxu0 0.0
        %731 = vmatpush1.msra.mxu0 0.0
        %732 = vmatprep.subr.mxu0 0.0
        %733 = vmatpush1.msra.mxu0 0.0
        %734 = vmatprep.subr.mxu0 0.0
        %735 = vmatpush1.msra.mxu0 0.0
        %736 = vmatprep.subr.mxu0 0.0
        %737 = vmatpush1.msra.mxu0 0.0
        %738 = vmatprep.subr.mxu0 0.0
        %739 = vmatpush1.msra.mxu0 0.0
        %740 = vmatprep.subr.mxu0 0.0
        %741 = vmatpush1.msra.mxu0 0.0
        %742 = vmatprep.subr.mxu0 0.0
        %743 = vmatpush1.msra.mxu0 0.0
        %744 = vmatprep.subr.mxu0 0.0
        %745 = vmatpush1.msra.mxu0 0.0
        %746 = vmatprep.subr.mxu0 0.0
        %747 = vmatpush1.msra.mxu0 0.0
        %748 = vmatprep.subr.mxu0 0.0
        %749 = vmatpush1.msra.mxu0 0.0
        %750 = vmatprep.subr.mxu0 0.0
        %751 = vmatpush1.msra.mxu0 0.0
        %752 = vmatprep.subr.mxu0 0.0
        %753 = vmatpush1.msra.mxu0 0.0
        %754 = vmatprep.subr.mxu0 0.0
        %755 = vmatpush1.msra.mxu0 0.0
        %756 = vmatprep.subr.mxu0 0.0
        %757 = vmatpush1.msra.mxu0 0.0
        %758 = vmatprep.subr.mxu0 0.0
        %759 = vmatpush1.msra.mxu0 0.0
        %760 = vmatprep.subr.mxu0 0.0
        %761 = vmatpush1.msra.mxu0 0.0
        %762 = vmatprep.subr.mxu0 0.0
        %763 = vmatpush1.msra.mxu0 0.0
        %764 = vmatprep.subr.mxu0 0.0
        %765 = vmatpush1.msra.mxu0 0.0
        %766 = vmatprep.subr.mxu0 0.0
        %767 = vmatpush1.msra.mxu0 0.0
        %768 = vmatprep.subr.mxu0 0.0
        %769 = vmatpush1.msra.mxu0 0.0
        %770 = vmatprep.subr.mxu0 0.0
        %771 = vmatpush1.msra.mxu0 0.0
        %772 = vmatprep.subr.mxu0 0.0
        %773 = vmatpush1.msra.mxu0 0.0
        %774 = vmatprep.subr.mxu0 0.0
        %775 = vmatpush1.msra.mxu0 0.0
        %776 = vmatprep.subr.mxu0 0.0
        %777 = vmatpush1.msra.mxu0 0.0
        %778 = vmatprep.subr.mxu0 0.0
        %779 = vmatpush1.msra.mxu0 0.0
        %780 = vmatprep.subr.mxu0 0.0
        %781 = vmatpush1.msra.mxu0 0.0
        %782 = vmatprep.subr.mxu0 0.0
        %783 = vmatpush1.msra.mxu0 0.0
        %784 = vmatprep.subr.mxu0 0.0
        %785 = vmatpush1.msra.mxu0 0.0
        %786 = vmatprep.subr.mxu0 0.0
        %787 = vmatpush1.msra.mxu0 0.0
        %788 = vmatprep.subr.mxu0 0.0
        %789 = vmatpush1.msra.mxu0 0.0
        %790 = vmatprep.subr.mxu0 0.0
        %791 = vmatpush1.msra.mxu0 0.0
        %792 = vmatprep.mubr.f32.mxu0 0.0
        %793 = vmatmul.mubr.f32.gmra.mrb[0].mxu0 %v722
        %v794 = vpop.f32.mrb[0].mxu0
        %v795 = vadd.f32 0.0, %v794
        %v796 = vpop.f32.mrb[0].mxu0
        %v797 = vadd.f32 0.0, %v796
        %798 = vdwg.mxu0
        %v799 = vadd.f32 %v708, %v795
        %v800 = vadd.f32 %v709, %v797
        %s801 = scalar_lea.vmem [#allocation3], 48
        %v802 = vld [vmem:[%s801] sm:$0xff]
        %803 = vrot.lane.b32.xlu0 %v261, 96
        %v804 = vpop.permute.xlu0 %803
        %805 = vrot.lane.b32.xlu0 %v262, 96
        %v806 = vpop.permute.xlu0 %805
        %807 = vrot.lane.b32.xlu0 %v264, 96
        %v808 = vpop.permute.xlu0 %807
        %vm809 = vcmask 785408
        %v810 = vsel %vm809, %v804, %v806
        %v811 = vsel %vm809, %v806, %v808
        %v813 = vsel %vm279, %v802, 0
        %v815 = vsel %vm283, %v810, 0
        %v817 = vsel %vm283, %v811, 0
        %819 = vmatprep.subr.mxu0 %v817
        %820 = vmatpush1.msra.mxu0 %v815
        %821 = vmatprep.subr.mxu0 0.0
        %822 = vmatpush1.msra.mxu0 0.0
        %823 = vmatprep.subr.mxu0 0.0
        %824 = vmatpush1.msra.mxu0 0.0
        %825 = vmatprep.subr.mxu0 0.0
        %826 = vmatpush1.msra.mxu0 0.0
        %827 = vmatprep.subr.mxu0 0.0
        %828 = vmatpush1.msra.mxu0 0.0
        %829 = vmatprep.subr.mxu0 0.0
        %830 = vmatpush1.msra.mxu0 0.0
        %831 = vmatprep.subr.mxu0 0.0
        %832 = vmatpush1.msra.mxu0 0.0
        %833 = vmatprep.subr.mxu0 0.0
        %834 = vmatpush1.msra.mxu0 0.0
        %835 = vmatprep.subr.mxu0 0.0
        %836 = vmatpush1.msra.mxu0 0.0
        %837 = vmatprep.subr.mxu0 0.0
        %838 = vmatpush1.msra.mxu0 0.0
        %839 = vmatprep.subr.mxu0 0.0
        %840 = vmatpush1.msra.mxu0 0.0
        %841 = vmatprep.subr.mxu0 0.0
        %842 = vmatpush1.msra.mxu0 0.0
        %843 = vmatprep.subr.mxu0 0.0
        %844 = vmatpush1.msra.mxu0 0.0
        %845 = vmatprep.subr.mxu0 0.0
        %846 = vmatpush1.msra.mxu0 0.0
        %847 = vmatprep.subr.mxu0 0.0
        %848 = vmatpush1.msra.mxu0 0.0
        %849 = vmatprep.subr.mxu0 0.0
        %850 = vmatpush1.msra.mxu0 0.0
        %851 = vmatprep.subr.mxu0 0.0
        %852 = vmatpush1.msra.mxu0 0.0
        %853 = vmatprep.subr.mxu0 0.0
        %854 = vmatpush1.msra.mxu0 0.0
        %855 = vmatprep.subr.mxu0 0.0
        %856 = vmatpush1.msra.mxu0 0.0
        %857 = vmatprep.subr.mxu0 0.0
        %858 = vmatpush1.msra.mxu0 0.0
        %859 = vmatprep.subr.mxu0 0.0
        %860 = vmatpush1.msra.mxu0 0.0
        %861 = vmatprep.subr.mxu0 0.0
        %862 = vmatpush1.msra.mxu0 0.0
        %863 = vmatprep.subr.mxu0 0.0
        %864 = vmatpush1.msra.mxu0 0.0
        %865 = vmatprep.subr.mxu0 0.0
        %866 = vmatpush1.msra.mxu0 0.0
        %867 = vmatprep.subr.mxu0 0.0
        %868 = vmatpush1.msra.mxu0 0.0
        %869 = vmatprep.subr.mxu0 0.0
        %870 = vmatpush1.msra.mxu0 0.0
        %871 = vmatprep.subr.mxu0 0.0
        %872 = vmatpush1.msra.mxu0 0.0
        %873 = vmatprep.subr.mxu0 0.0
        %874 = vmatpush1.msra.mxu0 0.0
        %875 = vmatprep.subr.mxu0 0.0
        %876 = vmatpush1.msra.mxu0 0.0
        %877 = vmatprep.subr.mxu0 0.0
        %878 = vmatpush1.msra.mxu0 0.0
        %879 = vmatprep.subr.mxu0 0.0
        %880 = vmatpush1.msra.mxu0 0.0
        %881 = vmatprep.subr.mxu0 0.0
        %882 = vmatpush1.msra.mxu0 0.0
        %883 = vmatprep.mubr.f32.mxu0 0.0
        %884 = vmatmul.mubr.f32.gmra.mrb[0].mxu0 %v813
        %v885 = vpop.f32.mrb[0].mxu0
        %v886 = vadd.f32 0.0, %v885
        %v887 = vpop.f32.mrb[0].mxu0
        %v888 = vadd.f32 0.0, %v887
        %889 = vdwg.mxu0
        %v890 = vadd.f32 %v799, %v886
        %v891 = vadd.f32 %v800, %v888
        %s892 = scalar_lea.vmem [#allocation3], 56
        %v893 = vld [vmem:[%s892] sm:$0xff]
        %894 = vrot.lane.b32.xlu0 %v261, 95
        %v895 = vpop.permute.xlu0 %894
        %896 = vrot.lane.b32.xlu0 %v262, 95
        %v897 = vpop.permute.xlu0 %896
        %898 = vrot.lane.b32.xlu0 %v264, 95
        %v899 = vpop.permute.xlu0 %898
        %vm900 = vcmask 777216
        %v901 = vsel %vm900, %v895, %v897
        %v902 = vsel %vm900, %v897, %v899
        %v904 = vsel %vm279, %v893, 0
        %v906 = vsel %vm283, %v901, 0
        %v908 = vsel %vm283, %v902, 0
        %910 = vmatprep.subr.mxu0 %v908
        %911 = vmatpush1.msra.mxu0 %v906
        %912 = vmatprep.subr.mxu0 0.0
        %913 = vmatpush1.msra.mxu0 0.0
        %914 = vmatprep.subr.mxu0 0.0
        %915 = vmatpush1.msra.mxu0 0.0
        %916 = vmatprep.subr.mxu0 0.0
        %917 = vmatpush1.msra.mxu0 0.0
        %918 = vmatprep.subr.mxu0 0.0
        %919 = vmatpush1.msra.mxu0 0.0
        %920 = vmatprep.subr.mxu0 0.0
        %921 = vmatpush1.msra.mxu0 0.0
        %922 = vmatprep.subr.mxu0 0.0
        %923 = vmatpush1.msra.mxu0 0.0
        %924 = vmatprep.subr.mxu0 0.0
        %925 = vmatpush1.msra.mxu0 0.0
        %926 = vmatprep.subr.mxu0 0.0
        %927 = vmatpush1.msra.mxu0 0.0
        %928 = vmatprep.subr.mxu0 0.0
        %929 = vmatpush1.msra.mxu0 0.0
        %930 = vmatprep.subr.mxu0 0.0
        %931 = vmatpush1.msra.mxu0 0.0
        %932 = vmatprep.subr.mxu0 0.0
        %933 = vmatpush1.msra.mxu0 0.0
        %934 = vmatprep.subr.mxu0 0.0
        %935 = vmatpush1.msra.mxu0 0.0
        %936 = vmatprep.subr.mxu0 0.0
        %937 = vmatpush1.msra.mxu0 0.0
        %938 = vmatprep.subr.mxu0 0.0
        %939 = vmatpush1.msra.mxu0 0.0
        %940 = vmatprep.subr.mxu0 0.0
        %941 = vmatpush1.msra.mxu0 0.0
        %942 = vmatprep.subr.mxu0 0.0
        %943 = vmatpush1.msra.mxu0 0.0
        %944 = vmatprep.subr.mxu0 0.0
        %945 = vmatpush1.msra.mxu0 0.0
        %946 = vmatprep.subr.mxu0 0.0
        %947 = vmatpush1.msra.mxu0 0.0
        %948 = vmatprep.subr.mxu0 0.0
        %949 = vmatpush1.msra.mxu0 0.0
        %950 = vmatprep.subr.mxu0 0.0
        %951 = vmatpush1.msra.mxu0 0.0
        %952 = vmatprep.subr.mxu0 0.0
        %953 = vmatpush1.msra.mxu0 0.0
        %954 = vmatprep.subr.mxu0 0.0
        %955 = vmatpush1.msra.mxu0 0.0
        %956 = vmatprep.subr.mxu0 0.0
        %957 = vmatpush1.msra.mxu0 0.0
        %958 = vmatprep.subr.mxu0 0.0
        %959 = vmatpush1.msra.mxu0 0.0
        %960 = vmatprep.subr.mxu0 0.0
        %961 = vmatpush1.msra.mxu0 0.0
        %962 = vmatprep.subr.mxu0 0.0
        %963 = vmatpush1.msra.mxu0 0.0
        %964 = vmatprep.subr.mxu0 0.0
        %965 = vmatpush1.msra.mxu0 0.0
        %966 = vmatprep.subr.mxu0 0.0
        %967 = vmatpush1.msra.mxu0 0.0
        %968 = vmatprep.subr.mxu0 0.0
        %969 = vmatpush1.msra.mxu0 0.0
        %970 = vmatprep.subr.mxu0 0.0
        %971 = vmatpush1.msra.mxu0 0.0
        %972 = vmatprep.subr.mxu0 0.0
        %973 = vmatpush1.msra.mxu0 0.0
        %974 = vmatprep.mubr.f32.mxu0 0.0
        %975 = vmatmul.mubr.f32.gmra.mrb[0].mxu0 %v904
        %v976 = vpop.f32.mrb[0].mxu0
        %v977 = vadd.f32 0.0, %v976
        %v978 = vpop.f32.mrb[0].mxu0
        %v979 = vadd.f32 0.0, %v978
        %980 = vdwg.mxu0
        %v981 = vadd.f32 %v890, %v977
        %v982 = vadd.f32 %v891, %v979
        %s983 = scalar_lea.vmem [#allocation3], 64
        %v984 = vld [vmem:[%s983] sm:$0xff]
        %985 = vrot.lane.b32.xlu0 %v261, 94
        %v986 = vpop.permute.xlu0 %985
        %987 = vrot.lane.b32.xlu0 %v262, 94
        %v988 = vpop.permute.xlu0 %987
        %989 = vrot.lane.b32.xlu0 %v264, 94
        %v990 = vpop.permute.xlu0 %989
        %vm991 = vcmask 769024
        %v992 = vsel %vm991, %v986, %v988
        %v993 = vsel %vm991, %v988, %v990
        %v995 = vsel %vm279, %v984, 0
        %v997 = vsel %vm283, %v992, 0
        %v999 = vsel %vm283, %v993, 0
        %1001 = vmatprep.subr.mxu0 %v999
        %1002 = vmatpush1.msra.mxu0 %v997
        %1003 = vmatprep.subr.mxu0 0.0
        %1004 = vmatpush1.msra.mxu0 0.0
        %1005 = vmatprep.subr.mxu0 0.0
        %1006 = vmatpush1.msra.mxu0 0.0
        %1007 = vmatprep.subr.mxu0 0.0
        %1008 = vmatpush1.msra.mxu0 0.0
        %1009 = vmatprep.subr.mxu0 0.0
        %1010 = vmatpush1.msra.mxu0 0.0
        %1011 = vmatprep.subr.mxu0 0.0
        %1012 = vmatpush1.msra.mxu0 0.0
        %1013 = vmatprep.subr.mxu0 0.0
        %1014 = vmatpush1.msra.mxu0 0.0
        %1015 = vmatprep.subr.mxu0 0.0
        %1016 = vmatpush1.msra.mxu0 0.0
        %1017 = vmatprep.subr.mxu0 0.0
        %1018 = vmatpush1.msra.mxu0 0.0
        %1019 = vmatprep.subr.mxu0 0.0
        %1020 = vmatpush1.msra.mxu0 0.0
        %1021 = vmatprep.subr.mxu0 0.0
        %1022 = vmatpush1.msra.mxu0 0.0
        %1023 = vmatprep.subr.mxu0 0.0
        %1024 = vmatpush1.msra.mxu0 0.0
        %1025 = vmatprep.subr.mxu0 0.0
        %1026 = vmatpush1.msra.mxu0 0.0
        %1027 = vmatprep.subr.mxu0 0.0
        %1028 = vmatpush1.msra.mxu0 0.0
        %1029 = vmatprep.subr.mxu0 0.0
        %1030 = vmatpush1.msra.mxu0 0.0
        %1031 = vmatprep.subr.mxu0 0.0
        %1032 = vmatpush1.msra.mxu0 0.0
        %1033 = vmatprep.subr.mxu0 0.0
        %1034 = vmatpush1.msra.mxu0 0.0
        %1035 = vmatprep.subr.mxu0 0.0
        %1036 = vmatpush1.msra.mxu0 0.0
        %1037 = vmatprep.subr.mxu0 0.0
        %1038 = vmatpush1.msra.mxu0 0.0
        %1039 = vmatprep.subr.mxu0 0.0
        %1040 = vmatpush1.msra.mxu0 0.0
        %1041 = vmatprep.subr.mxu0 0.0
        %1042 = vmatpush1.msra.mxu0 0.0
        %1043 = vmatprep.subr.mxu0 0.0
        %1044 = vmatpush1.msra.mxu0 0.0
        %1045 = vmatprep.subr.mxu0 0.0
        %1046 = vmatpush1.msra.mxu0 0.0
        %1047 = vmatprep.subr.mxu0 0.0
        %1048 = vmatpush1.msra.mxu0 0.0
        %1049 = vmatprep.subr.mxu0 0.0
        %1050 = vmatpush1.msra.mxu0 0.0
        %1051 = vmatprep.subr.mxu0 0.0
        %1052 = vmatpush1.msra.mxu0 0.0
        %1053 = vmatprep.subr.mxu0 0.0
        %1054 = vmatpush1.msra.mxu0 0.0
        %1055 = vmatprep.subr.mxu0 0.0
        %1056 = vmatpush1.msra.mxu0 0.0
        %1057 = vmatprep.subr.mxu0 0.0
        %1058 = vmatpush1.msra.mxu0 0.0
        %1059 = vmatprep.subr.mxu0 0.0
        %1060 = vmatpush1.msra.mxu0 0.0
        %1061 = vmatprep.subr.mxu0 0.0
        %1062 = vmatpush1.msra.mxu0 0.0
        %1063 = vmatprep.subr.mxu0 0.0
        %1064 = vmatpush1.msra.mxu0 0.0
        %1065 = vmatprep.mubr.f32.mxu0 0.0
        %1066 = vmatmul.mubr.f32.gmra.mrb[0].mxu0 %v995
        %v1067 = vpop.f32.mrb[0].mxu0
        %v1068 = vadd.f32 0.0, %v1067
        %v1069 = vpop.f32.mrb[0].mxu0
        %v1070 = vadd.f32 0.0, %v1069
        %1071 = vdwg.mxu0
        %v1072 = vadd.f32 %v981, %v1068
        %v1073 = vadd.f32 %v982, %v1070
        %v1074 = vld [vmem:[%s2] sm:$0xff]
        %1076 = vset.pattern.permute.xlu0 0
        %1077 = vperm.xlu0 %1076, %v1074
        %v1078 = vpop.permute.xlu0 %1077
        %v1080 = vadd.f32 %v1072, %v1078
        %v1081 = vadd.f32 %v1073, %v1078
        %v1082 = vmax.f32 %v1080, 0.0
        %v1083 = vmax.f32 %v1081, 0.0
        %1084 = vst [vmem:[#allocation2] sm:$0xff] %v1082
        %1085 = vst [vmem:[#allocation2 + $0x8] sm:$0xff] %v1083
        %v1086 = vld [vmem:[#allocation2] sm:$0xff]
        %v1087 = vld [vmem:[#allocation2 + $0x8] sm:$0xff]
        %v1088 = vld [vmem:[%s3] sm:$0xff]
        %v1089 = vld [vmem:[%s3 + $0x8] sm:$0xff]
        %v1090 = vld [vmem:[#allocation2 + $0x10] sm:$0xff]
        %s1091 = scalar_lea.vmem %s3, 16
        %v1092 = vld [vmem:[%s1091] sm:$0xff]
        %v1093 = vld [vmem:[%s1091 + $0x8] sm:$0xff]
        %1097 = vrot.lane.b32.xlu0 %v1086, 127
        %v1098 = vpop.permute.xlu0 %1097
        %1099 = vrot.lane.b32.xlu0 %v1087, 127
        %v1100 = vpop.permute.xlu0 %1099
        %1101 = vrot.lane.b32.xlu0 %v1090, 127
        %v1102 = vpop.permute.xlu0 %1101
        %v1103 = vsel %vm276, %v1098, %v1100
        %v1104 = vsel %vm276, %v1100, %v1102
        %vm1107 = vcmask 64512
        %v1109 = vsel %vm1107, %v1092, 0
        %v1112 = vsel %vm1107, %v1093, 0
        %1114 = vmatprep.subr.mxu0 %v1104
        %1115 = vmatpush1.msra.mxu0 %v1103
        %1116 = vmatprep.subr.mxu0 0.0
        %1117 = vmatpush1.msra.mxu0 0.0
        %1118 = vmatprep.subr.mxu0 0.0
        %1119 = vmatpush1.msra.mxu0 0.0
        %1120 = vmatprep.subr.mxu0 0.0
        %1121 = vmatpush1.msra.mxu0 0.0
        %1122 = vmatprep.subr.mxu0 0.0
        %1123 = vmatpush1.msra.mxu0 0.0
        %1124 = vmatprep.subr.mxu0 0.0
        %1125 = vmatpush1.msra.mxu0 0.0
        %1126 = vmatprep.subr.mxu0 0.0
        %1127 = vmatpush1.msra.mxu0 0.0
        %1128 = vmatprep.subr.mxu0 0.0
        %1129 = vmatpush1.msra.mxu0 0.0
        %1130 = vmatprep.subr.mxu0 0.0
        %1131 = vmatpush1.msra.mxu0 0.0
        %1132 = vmatprep.subr.mxu0 0.0
        %1133 = vmatpush1.msra.mxu0 0.0
        %1134 = vmatprep.subr.mxu0 0.0
        %1135 = vmatpush1.msra.mxu0 0.0
        %1136 = vmatprep.subr.mxu0 0.0
        %1137 = vmatpush1.msra.mxu0 0.0
        %1138 = vmatprep.subr.mxu0 0.0
        %1139 = vmatpush1.msra.mxu0 0.0
        %1140 = vmatprep.subr.mxu0 0.0
        %1141 = vmatpush1.msra.mxu0 0.0
        %1142 = vmatprep.subr.mxu0 0.0
        %1143 = vmatpush1.msra.mxu0 0.0
        %1144 = vmatprep.subr.mxu0 0.0
        %1145 = vmatpush1.msra.mxu0 0.0
        %1146 = vmatprep.subr.mxu0 0.0
        %1147 = vmatpush1.msra.mxu0 0.0
        %1148 = vmatprep.subr.mxu0 0.0
        %1149 = vmatpush1.msra.mxu0 0.0
        %1150 = vmatprep.subr.mxu0 0.0
        %1151 = vmatpush1.msra.mxu0 0.0
        %1152 = vmatprep.subr.mxu0 0.0
        %1153 = vmatpush1.msra.mxu0 0.0
        %1154 = vmatprep.subr.mxu0 0.0
        %1155 = vmatpush1.msra.mxu0 0.0
        %1156 = vmatprep.subr.mxu0 0.0
        %1157 = vmatpush1.msra.mxu0 0.0
        %1158 = vmatprep.subr.mxu0 0.0
        %1159 = vmatpush1.msra.mxu0 0.0
        %1160 = vmatprep.subr.mxu0 0.0
        %1161 = vmatpush1.msra.mxu0 0.0
        %1162 = vmatprep.subr.mxu0 0.0
        %1163 = vmatpush1.msra.mxu0 0.0
        %1164 = vmatprep.subr.mxu0 0.0
        %1165 = vmatpush1.msra.mxu0 0.0
        %1166 = vmatprep.subr.mxu0 0.0
        %1167 = vmatpush1.msra.mxu0 0.0
        %1168 = vmatprep.subr.mxu0 0.0
        %1169 = vmatpush1.msra.mxu0 0.0
        %1170 = vmatprep.subr.mxu0 0.0
        %1171 = vmatpush1.msra.mxu0 0.0
        %1172 = vmatprep.subr.mxu0 0.0
        %1173 = vmatpush1.msra.mxu0 0.0
        %1174 = vmatprep.subr.mxu0 0.0
        %1175 = vmatpush1.msra.mxu0 0.0
        %1176 = vmatprep.subr.mxu0 0.0
        %1177 = vmatpush1.msra.mxu0 0.0
        %1178 = vmatprep.mubr.f32.mxu0 0.0
        %1179 = vmatmul.mubr.f32.gmra.mrb[0].mxu0 %v1109
        %v1180 = vpop.f32.mrb[0].mxu0
        %v1181 = vadd.f32 0.0, %v1180
        %v1182 = vpop.f32.mrb[0].mxu0
        %v1183 = vadd.f32 0.0, %v1182
        %1184 = vmatprep.mubr.f32.mxu0 0.0
        %1185 = vmatmul.mubr.f32.gmra.mrb[0].mxu0 %v1112
        %v1186 = vpop.f32.mrb[0].mxu0
        %v1187 = vadd.f32 0.0, %v1186
        %v1188 = vpop.f32.mrb[0].mxu0
        %v1189 = vadd.f32 0.0, %v1188
        %1190 = vdwg.mxu0
        %v1192 = vsel %vm1107, %v1088, 0
        %v1195 = vsel %vm1107, %v1089, 0
        %1197 = vmatprep.subr.mxu0 %v1087
        %1198 = vmatpush1.msra.mxu0 %v1086
        %1199 = vmatprep.subr.mxu0 0.0
        %1200 = vmatpush1.msra.mxu0 0.0
        %1201 = vmatprep.subr.mxu0 0.0
        %1202 = vmatpush1.msra.mxu0 0.0
        %1203 = vmatprep.subr.mxu0 0.0
        %1204 = vmatpush1.msra.mxu0 0.0
        %1205 = vmatprep.subr.mxu0 0.0
        %1206 = vmatpush1.msra.mxu0 0.0
        %1207 = vmatprep.subr.mxu0 0.0
        %1208 = vmatpush1.msra.mxu0 0.0
        %1209 = vmatprep.subr.mxu0 0.0
        %1210 = vmatpush1.msra.mxu0 0.0
        %1211 = vmatprep.subr.mxu0 0.0
        %1212 = vmatpush1.msra.mxu0 0.0
        %1213 = vmatprep.subr.mxu0 0.0
        %1214 = vmatpush1.msra.mxu0 0.0
        %1215 = vmatprep.subr.mxu0 0.0
        %1216 = vmatpush1.msra.mxu0 0.0
        %1217 = vmatprep.subr.mxu0 0.0
        %1218 = vmatpush1.msra.mxu0 0.0
        %1219 = vmatprep.subr.mxu0 0.0
        %1220 = vmatpush1.msra.mxu0 0.0
        %1221 = vmatprep.subr.mxu0 0.0
        %1222 = vmatpush1.msra.mxu0 0.0
        %1223 = vmatprep.subr.mxu0 0.0
        %1224 = vmatpush1.msra.mxu0 0.0
        %1225 = vmatprep.subr.mxu0 0.0
        %1226 = vmatpush1.msra.mxu0 0.0
        %1227 = vmatprep.subr.mxu0 0.0
        %1228 = vmatpush1.msra.mxu0 0.0
        %1229 = vmatprep.subr.mxu0 0.0
        %1230 = vmatpush1.msra.mxu0 0.0
        %1231 = vmatprep.subr.mxu0 0.0
        %1232 = vmatpush1.msra.mxu0 0.0
        %1233 = vmatprep.subr.mxu0 0.0
        %1234 = vmatpush1.msra.mxu0 0.0
        %1235 = vmatprep.subr.mxu0 0.0
        %1236 = vmatpush1.msra.mxu0 0.0
        %1237 = vmatprep.subr.mxu0 0.0
        %1238 = vmatpush1.msra.mxu0 0.0
        %1239 = vmatprep.subr.mxu0 0.0
        %1240 = vmatpush1.msra.mxu0 0.0
        %1241 = vmatprep.subr.mxu0 0.0
        %1242 = vmatpush1.msra.mxu0 0.0
        %1243 = vmatprep.subr.mxu0 0.0
        %1244 = vmatpush1.msra.mxu0 0.0
        %1245 = vmatprep.subr.mxu0 0.0
        %1246 = vmatpush1.msra.mxu0 0.0
        %1247 = vmatprep.subr.mxu0 0.0
        %1248 = vmatpush1.msra.mxu0 0.0
        %1249 = vmatprep.subr.mxu0 0.0
        %1250 = vmatpush1.msra.mxu0 0.0
        %1251 = vmatprep.subr.mxu0 0.0
        %1252 = vmatpush1.msra.mxu0 0.0
        %1253 = vmatprep.subr.mxu0 0.0
        %1254 = vmatpush1.msra.mxu0 0.0
        %1255 = vmatprep.subr.mxu0 0.0
        %1256 = vmatpush1.msra.mxu0 0.0
        %1257 = vmatprep.subr.mxu0 0.0
        %1258 = vmatpush1.msra.mxu0 0.0
        %1259 = vmatprep.subr.mxu0 0.0
        %1260 = vmatpush1.msra.mxu0 0.0
        %1261 = vmatprep.mubr.f32.mxu0 0.0
        %1262 = vmatmul.mubr.f32.gmra.mrb[0].mxu0 %v1192
        %v1263 = vpop.f32.mrb[0].mxu0
        %v1264 = vadd.f32 %v1181, %v1263
        %v1265 = vpop.f32.mrb[0].mxu0
        %v1266 = vadd.f32 %v1183, %v1265
        %1267 = vmatprep.mubr.f32.mxu0 0.0
        %1268 = vmatmul.mubr.f32.gmra.mrb[0].mxu0 %v1195
        %v1269 = vpop.f32.mrb[0].mxu0
        %v1270 = vadd.f32 %v1187, %v1269
        %v1271 = vpop.f32.mrb[0].mxu0
        %v1272 = vadd.f32 %v1189, %v1271
        %1273 = vdwg.mxu0
        %s1274 = scalar_lea.vmem %s3, 32
        %v1275 = vld [vmem:[%s1274] sm:$0xff]
        %v1276 = vld [vmem:[%s1274 + $0x8] sm:$0xff]
        %1277 = vrot.lane.b32.xlu0 %v1086, 126
        %v1278 = vpop.permute.xlu0 %1277
        %1279 = vrot.lane.b32.xlu0 %v1087, 126
        %v1280 = vpop.permute.xlu0 %1279
        %1281 = vrot.lane.b32.xlu0 %v1090, 126
        %v1282 = vpop.permute.xlu0 %1281
        %v1283 = vsel %vm445, %v1278, %v1280
        %v1284 = vsel %vm445, %v1280, %v1282
        %v1288 = vsel %vm1107, %v1275, 0
        %v1291 = vsel %vm1107, %v1276, 0
        %1293 = vmatprep.subr.mxu0 %v1284
        %1294 = vmatpush1.msra.mxu0 %v1283
        %1295 = vmatprep.subr.mxu0 0.0
        %1296 = vmatpush1.msra.mxu0 0.0
        %1297 = vmatprep.subr.mxu0 0.0
        %1298 = vmatpush1.msra.mxu0 0.0
        %1299 = vmatprep.subr.mxu0 0.0
        %1300 = vmatpush1.msra.mxu0 0.0
        %1301 = vmatprep.subr.mxu0 0.0
        %1302 = vmatpush1.msra.mxu0 0.0
        %1303 = vmatprep.subr.mxu0 0.0
        %1304 = vmatpush1.msra.mxu0 0.0
        %1305 = vmatprep.subr.mxu0 0.0
        %1306 = vmatpush1.msra.mxu0 0.0
        %1307 = vmatprep.subr.mxu0 0.0
        %1308 = vmatpush1.msra.mxu0 0.0
        %1309 = vmatprep.subr.mxu0 0.0
        %1310 = vmatpush1.msra.mxu0 0.0
        %1311 = vmatprep.subr.mxu0 0.0
        %1312 = vmatpush1.msra.mxu0 0.0
        %1313 = vmatprep.subr.mxu0 0.0
        %1314 = vmatpush1.msra.mxu0 0.0
        %1315 = vmatprep.subr.mxu0 0.0
        %1316 = vmatpush1.msra.mxu0 0.0
        %1317 = vmatprep.subr.mxu0 0.0
        %1318 = vmatpush1.msra.mxu0 0.0
        %1319 = vmatprep.subr.mxu0 0.0
        %1320 = vmatpush1.msra.mxu0 0.0
        %1321 = vmatprep.subr.mxu0 0.0
        %1322 = vmatpush1.msra.mxu0 0.0
        %1323 = vmatprep.subr.mxu0 0.0
        %1324 = vmatpush1.msra.mxu0 0.0
        %1325 = vmatprep.subr.mxu0 0.0
        %1326 = vmatpush1.msra.mxu0 0.0
        %1327 = vmatprep.subr.mxu0 0.0
        %1328 = vmatpush1.msra.mxu0 0.0
        %1329 = vmatprep.subr.mxu0 0.0
        %1330 = vmatpush1.msra.mxu0 0.0
        %1331 = vmatprep.subr.mxu0 0.0
        %1332 = vmatpush1.msra.mxu0 0.0
        %1333 = vmatprep.subr.mxu0 0.0
        %1334 = vmatpush1.msra.mxu0 0.0
        %1335 = vmatprep.subr.mxu0 0.0
        %1336 = vmatpush1.msra.mxu0 0.0
        %1337 = vmatprep.subr.mxu0 0.0
        %1338 = vmatpush1.msra.mxu0 0.0
        %1339 = vmatprep.subr.mxu0 0.0
        %1340 = vmatpush1.msra.mxu0 0.0
        %1341 = vmatprep.subr.mxu0 0.0
        %1342 = vmatpush1.msra.mxu0 0.0
        %1343 = vmatprep.subr.mxu0 0.0
        %1344 = vmatpush1.msra.mxu0 0.0
        %1345 = vmatprep.subr.mxu0 0.0
        %1346 = vmatpush1.msra.mxu0 0.0
        %1347 = vmatprep.subr.mxu0 0.0
        %1348 = vmatpush1.msra.mxu0 0.0
        %1349 = vmatprep.subr.mxu0 0.0
        %1350 = vmatpush1.msra.mxu0 0.0
        %1351 = vmatprep.subr.mxu0 0.0
        %1352 = vmatpush1.msra.mxu0 0.0
        %1353 = vmatprep.subr.mxu0 0.0
        %1354 = vmatpush1.msra.mxu0 0.0
        %1355 = vmatprep.subr.mxu0 0.0
        %1356 = vmatpush1.msra.mxu0 0.0
        %1357 = vmatprep.mubr.f32.mxu0 0.0
        %1358 = vmatmul.mubr.f32.gmra.mrb[0].mxu0 %v1288
        %v1359 = vpop.f32.mrb[0].mxu0
        %v1360 = vadd.f32 0.0, %v1359
        %v1361 = vpop.f32.mrb[0].mxu0
        %v1362 = vadd.f32 0.0, %v1361
        %1363 = vmatprep.mubr.f32.mxu0 0.0
        %1364 = vmatmul.mubr.f32.gmra.mrb[0].mxu0 %v1291
        %v1365 = vpop.f32.mrb[0].mxu0
        %v1366 = vadd.f32 0.0, %v1365
        %v1367 = vpop.f32.mrb[0].mxu0
        %v1368 = vadd.f32 0.0, %v1367
        %1369 = vdwg.mxu0
        %v1370 = vadd.f32 %v1264, %v1360
        %v1371 = vadd.f32 %v1266, %v1362
        %v1372 = vadd.f32 %v1270, %v1366
        %v1373 = vadd.f32 %v1272, %v1368
        %s1374 = scalar_lea.vmem %s3, 48
        %v1375 = vld [vmem:[%s1374] sm:$0xff]
        %v1376 = vld [vmem:[%s1374 + $0x8] sm:$0xff]
        %1377 = vrot.lane.b32.xlu0 %v1086, 112
        %v1378 = vpop.permute.xlu0 %1377
        %1379 = vrot.lane.b32.xlu0 %v1087, 112
        %v1380 = vpop.permute.xlu0 %1379
        %1381 = vrot.lane.b32.xlu0 %v1090, 112
        %v1382 = vpop.permute.xlu0 %1381
        %v1383 = vsel %vm536, %v1378, %v1380
        %v1384 = vsel %vm536, %v1380, %v1382
        %v1388 = vsel %vm1107, %v1375, 0
        %v1391 = vsel %vm1107, %v1376, 0
        %1393 = vmatprep.subr.mxu0 %v1384
        %1394 = vmatpush1.msra.mxu0 %v1383
        %1395 = vmatprep.subr.mxu0 0.0
        %1396 = vmatpush1.msra.mxu0 0.0
        %1397 = vmatprep.subr.mxu0 0.0
        %1398 = vmatpush1.msra.mxu0 0.0
        %1399 = vmatprep.subr.mxu0 0.0
        %1400 = vmatpush1.msra.mxu0 0.0
        %1401 = vmatprep.subr.mxu0 0.0
        %1402 = vmatpush1.msra.mxu0 0.0
        %1403 = vmatprep.subr.mxu0 0.0
        %1404 = vmatpush1.msra.mxu0 0.0
        %1405 = vmatprep.subr.mxu0 0.0
        %1406 = vmatpush1.msra.mxu0 0.0
        %1407 = vmatprep.subr.mxu0 0.0
        %1408 = vmatpush1.msra.mxu0 0.0
        %1409 = vmatprep.subr.mxu0 0.0
        %1410 = vmatpush1.msra.mxu0 0.0
        %1411 = vmatprep.subr.mxu0 0.0
        %1412 = vmatpush1.msra.mxu0 0.0
        %1413 = vmatprep.subr.mxu0 0.0
        %1414 = vmatpush1.msra.mxu0 0.0
        %1415 = vmatprep.subr.mxu0 0.0
        %1416 = vmatpush1.msra.mxu0 0.0
        %1417 = vmatprep.subr.mxu0 0.0
        %1418 = vmatpush1.msra.mxu0 0.0
        %1419 = vmatprep.subr.mxu0 0.0
        %1420 = vmatpush1.msra.mxu0 0.0
        %1421 = vmatprep.subr.mxu0 0.0
        %1422 = vmatpush1.msra.mxu0 0.0
        %1423 = vmatprep.subr.mxu0 0.0
        %1424 = vmatpush1.msra.mxu0 0.0
        %1425 = vmatprep.subr.mxu0 0.0
        %1426 = vmatpush1.msra.mxu0 0.0
        %1427 = vmatprep.subr.mxu0 0.0
        %1428 = vmatpush1.msra.mxu0 0.0
        %1429 = vmatprep.subr.mxu0 0.0
        %1430 = vmatpush1.msra.mxu0 0.0
        %1431 = vmatprep.subr.mxu0 0.0
        %1432 = vmatpush1.msra.mxu0 0.0
        %1433 = vmatprep.subr.mxu0 0.0
        %1434 = vmatpush1.msra.mxu0 0.0
        %1435 = vmatprep.subr.mxu0 0.0
        %1436 = vmatpush1.msra.mxu0 0.0
        %1437 = vmatprep.subr.mxu0 0.0
        %1438 = vmatpush1.msra.mxu0 0.0
        %1439 = vmatprep.subr.mxu0 0.0
        %1440 = vmatpush1.msra.mxu0 0.0
        %1441 = vmatprep.subr.mxu0 0.0
        %1442 = vmatpush1.msra.mxu0 0.0
        %1443 = vmatprep.subr.mxu0 0.0
        %1444 = vmatpush1.msra.mxu0 0.0
        %1445 = vmatprep.subr.mxu0 0.0
        %1446 = vmatpush1.msra.mxu0 0.0
        %1447 = vmatprep.subr.mxu0 0.0
        %1448 = vmatpush1.msra.mxu0 0.0
        %1449 = vmatprep.subr.mxu0 0.0
        %1450 = vmatpush1.msra.mxu0 0.0
        %1451 = vmatprep.subr.mxu0 0.0
        %1452 = vmatpush1.msra.mxu0 0.0
        %1453 = vmatprep.subr.mxu0 0.0
        %1454 = vmatpush1.msra.mxu0 0.0
        %1455 = vmatprep.subr.mxu0 0.0
        %1456 = vmatpush1.msra.mxu0 0.0
        %1457 = vmatprep.mubr.f32.mxu0 0.0
        %1458 = vmatmul.mubr.f32.gmra.mrb[0].mxu0 %v1388
        %v1459 = vpop.f32.mrb[0].mxu0
        %v1460 = vadd.f32 0.0, %v1459
        %v1461 = vpop.f32.mrb[0].mxu0
        %v1462 = vadd.f32 0.0, %v1461
        %1463 = vmatprep.mubr.f32.mxu0 0.0
        %1464 = vmatmul.mubr.f32.gmra.mrb[0].mxu0 %v1391
        %v1465 = vpop.f32.mrb[0].mxu0
        %v1466 = vadd.f32 0.0, %v1465
        %v1467 = vpop.f32.mrb[0].mxu0
        %v1468 = vadd.f32 0.0, %v1467
        %1469 = vdwg.mxu0
        %v1470 = vadd.f32 %v1370, %v1460
        %v1471 = vadd.f32 %v1371, %v1462
        %v1472 = vadd.f32 %v1372, %v1466
        %v1473 = vadd.f32 %v1373, %v1468
        %s1474 = scalar_lea.vmem %s3, 64
        %v1475 = vld [vmem:[%s1474] sm:$0xff]
        %v1476 = vld [vmem:[%s1474 + $0x8] sm:$0xff]
        %1477 = vrot.lane.b32.xlu0 %v1086, 111
        %v1478 = vpop.permute.xlu0 %1477
        %1479 = vrot.lane.b32.xlu0 %v1087, 111
        %v1480 = vpop.permute.xlu0 %1479
        %1481 = vrot.lane.b32.xlu0 %v1090, 111
        %v1482 = vpop.permute.xlu0 %1481
        %v1483 = vsel %vm627, %v1478, %v1480
        %v1484 = vsel %vm627, %v1480, %v1482
        %v1488 = vsel %vm1107, %v1475, 0
        %v1491 = vsel %vm1107, %v1476, 0
        %1493 = vmatprep.subr.mxu0 %v1484
        %1494 = vmatpush1.msra.mxu0 %v1483
        %1495 = vmatprep.subr.mxu0 0.0
        %1496 = vmatpush1.msra.mxu0 0.0
        %1497 = vmatprep.subr.mxu0 0.0
        %1498 = vmatpush1.msra.mxu0 0.0
        %1499 = vmatprep.subr.mxu0 0.0
        %1500 = vmatpush1.msra.mxu0 0.0
        %1501 = vmatprep.subr.mxu0 0.0
        %1502 = vmatpush1.msra.mxu0 0.0
        %1503 = vmatprep.subr.mxu0 0.0
        %1504 = vmatpush1.msra.mxu0 0.0
        %1505 = vmatprep.subr.mxu0 0.0
        %1506 = vmatpush1.msra.mxu0 0.0
        %1507 = vmatprep.subr.mxu0 0.0
        %1508 = vmatpush1.msra.mxu0 0.0
        %1509 = vmatprep.subr.mxu0 0.0
        %1510 = vmatpush1.msra.mxu0 0.0
        %1511 = vmatprep.subr.mxu0 0.0
        %1512 = vmatpush1.msra.mxu0 0.0
        %1513 = vmatprep.subr.mxu0 0.0
        %1514 = vmatpush1.msra.mxu0 0.0
        %1515 = vmatprep.subr.mxu0 0.0
        %1516 = vmatpush1.msra.mxu0 0.0
        %1517 = vmatprep.subr.mxu0 0.0
        %1518 = vmatpush1.msra.mxu0 0.0
        %1519 = vmatprep.subr.mxu0 0.0
        %1520 = vmatpush1.msra.mxu0 0.0
        %1521 = vmatprep.subr.mxu0 0.0
        %1522 = vmatpush1.msra.mxu0 0.0
        %1523 = vmatprep.subr.mxu0 0.0
        %1524 = vmatpush1.msra.mxu0 0.0
        %1525 = vmatprep.subr.mxu0 0.0
        %1526 = vmatpush1.msra.mxu0 0.0
        %1527 = vmatprep.subr.mxu0 0.0
        %1528 = vmatpush1.msra.mxu0 0.0
        %1529 = vmatprep.subr.mxu0 0.0
        %1530 = vmatpush1.msra.mxu0 0.0
        %1531 = vmatprep.subr.mxu0 0.0
        %1532 = vmatpush1.msra.mxu0 0.0
        %1533 = vmatprep.subr.mxu0 0.0
        %1534 = vmatpush1.msra.mxu0 0.0
        %1535 = vmatprep.subr.mxu0 0.0
        %1536 = vmatpush1.msra.mxu0 0.0
        %1537 = vmatprep.subr.mxu0 0.0
        %1538 = vmatpush1.msra.mxu0 0.0
        %1539 = vmatprep.subr.mxu0 0.0
        %1540 = vmatpush1.msra.mxu0 0.0
        %1541 = vmatprep.subr.mxu0 0.0
        %1542 = vmatpush1.msra.mxu0 0.0
        %1543 = vmatprep.subr.mxu0 0.0
        %1544 = vmatpush1.msra.mxu0 0.0
        %1545 = vmatprep.subr.mxu0 0.0
        %1546 = vmatpush1.msra.mxu0 0.0
        %1547 = vmatprep.subr.mxu0 0.0
        %1548 = vmatpush1.msra.mxu0 0.0
        %1549 = vmatprep.subr.mxu0 0.0
        %1550 = vmatpush1.msra.mxu0 0.0
        %1551 = vmatprep.subr.mxu0 0.0
        %1552 = vmatpush1.msra.mxu0 0.0
        %1553 = vmatprep.subr.mxu0 0.0
        %1554 = vmatpush1.msra.mxu0 0.0
        %1555 = vmatprep.subr.mxu0 0.0
        %1556 = vmatpush1.msra.mxu0 0.0
        %1557 = vmatprep.mubr.f32.mxu0 0.0
        %1558 = vmatmul.mubr.f32.gmra.mrb[0].mxu0 %v1488
        %v1559 = vpop.f32.mrb[0].mxu0
        %v1560 = vadd.f32 0.0, %v1559
        %v1561 = vpop.f32.mrb[0].mxu0
        %v1562 = vadd.f32 0.0, %v1561
        %1563 = vmatprep.mubr.f32.mxu0 0.0
        %1564 = vmatmul.mubr.f32.gmra.mrb[0].mxu0 %v1491
        %v1565 = vpop.f32.mrb[0].mxu0
        %v1566 = vadd.f32 0.0, %v1565
        %v1567 = vpop.f32.mrb[0].mxu0
        %v1568 = vadd.f32 0.0, %v1567
        %1569 = vdwg.mxu0
        %v1570 = vadd.f32 %v1470, %v1560
        %v1571 = vadd.f32 %v1471, %v1562
        %v1572 = vadd.f32 %v1472, %v1566
        %v1573 = vadd.f32 %v1473, %v1568
        %s1574 = scalar_lea.vmem %s3, 80
        %v1575 = vld [vmem:[%s1574] sm:$0xff]
        %v1576 = vld [vmem:[%s1574 + $0x8] sm:$0xff]
        %1577 = vrot.lane.b32.xlu0 %v1086, 110
        %v1578 = vpop.permute.xlu0 %1577
        %1579 = vrot.lane.b32.xlu0 %v1087, 110
        %v1580 = vpop.permute.xlu0 %1579
        %1581 = vrot.lane.b32.xlu0 %v1090, 110
        %v1582 = vpop.permute.xlu0 %1581
        %v1583 = vsel %vm718, %v1578, %v1580
        %v1584 = vsel %vm718, %v1580, %v1582
        %v1588 = vsel %vm1107, %v1575, 0
        %v1591 = vsel %vm1107, %v1576, 0
        %1593 = vmatprep.subr.mxu0 %v1584
        %1594 = vmatpush1.msra.mxu0 %v1583
        %1595 = vmatprep.subr.mxu0 0.0
        %1596 = vmatpush1.msra.mxu0 0.0
        %1597 = vmatprep.subr.mxu0 0.0
        %1598 = vmatpush1.msra.mxu0 0.0
        %1599 = vmatprep.subr.mxu0 0.0
        %1600 = vmatpush1.msra.mxu0 0.0
        %1601 = vmatprep.subr.mxu0 0.0
        %1602 = vmatpush1.msra.mxu0 0.0
        %1603 = vmatprep.subr.mxu0 0.0
        %1604 = vmatpush1.msra.mxu0 0.0
        %1605 = vmatprep.subr.mxu0 0.0
        %1606 = vmatpush1.msra.mxu0 0.0
        %1607 = vmatprep.subr.mxu0 0.0
        %1608 = vmatpush1.msra.mxu0 0.0
        %1609 = vmatprep.subr.mxu0 0.0
        %1610 = vmatpush1.msra.mxu0 0.0
        %1611 = vmatprep.subr.mxu0 0.0
        %1612 = vmatpush1.msra.mxu0 0.0
        %1613 = vmatprep.subr.mxu0 0.0
        %1614 = vmatpush1.msra.mxu0 0.0
        %1615 = vmatprep.subr.mxu0 0.0
        %1616 = vmatpush1.msra.mxu0 0.0
        %1617 = vmatprep.subr.mxu0 0.0
        %1618 = vmatpush1.msra.mxu0 0.0
        %1619 = vmatprep.subr.mxu0 0.0
        %1620 = vmatpush1.msra.mxu0 0.0
        %1621 = vmatprep.subr.mxu0 0.0
        %1622 = vmatpush1.msra.mxu0 0.0
        %1623 = vmatprep.subr.mxu0 0.0
        %1624 = vmatpush1.msra.mxu0 0.0
        %1625 = vmatprep.subr.mxu0 0.0
        %1626 = vmatpush1.msra.mxu0 0.0
        %1627 = vmatprep.subr.mxu0 0.0
        %1628 = vmatpush1.msra.mxu0 0.0
        %1629 = vmatprep.subr.mxu0 0.0
        %1630 = vmatpush1.msra.mxu0 0.0
        %1631 = vmatprep.subr.mxu0 0.0
        %1632 = vmatpush1.msra.mxu0 0.0
        %1633 = vmatprep.subr.mxu0 0.0
        %1634 = vmatpush1.msra.mxu0 0.0
        %1635 = vmatprep.subr.mxu0 0.0
        %1636 = vmatpush1.msra.mxu0 0.0
        %1637 = vmatprep.subr.mxu0 0.0
        %1638 = vmatpush1.msra.mxu0 0.0
        %1639 = vmatprep.subr.mxu0 0.0
        %1640 = vmatpush1.msra.mxu0 0.0
        %1641 = vmatprep.subr.mxu0 0.0
        %1642 = vmatpush1.msra.mxu0 0.0
        %1643 = vmatprep.subr.mxu0 0.0
        %1644 = vmatpush1.msra.mxu0 0.0
        %1645 = vmatprep.subr.mxu0 0.0
        %1646 = vmatpush1.msra.mxu0 0.0
        %1647 = vmatprep.subr.mxu0 0.0
        %1648 = vmatpush1.msra.mxu0 0.0
        %1649 = vmatprep.subr.mxu0 0.0
        %1650 = vmatpush1.msra.mxu0 0.0
        %1651 = vmatprep.subr.mxu0 0.0
        %1652 = vmatpush1.msra.mxu0 0.0
        %1653 = vmatprep.subr.mxu0 0.0
        %1654 = vmatpush1.msra.mxu0 0.0
        %1655 = vmatprep.subr.mxu0 0.0
        %1656 = vmatpush1.msra.mxu0 0.0
        %1657 = vmatprep.mubr.f32.mxu0 0.0
        %1658 = vmatmul.mubr.f32.gmra.mrb[0].mxu0 %v1588
        %v1659 = vpop.f32.mrb[0].mxu0
        %v1660 = vadd.f32 0.0, %v1659
        %v1661 = vpop.f32.mrb[0].mxu0
        %v1662 = vadd.f32 0.0, %v1661
        %1663 = vmatprep.mubr.f32.mxu0 0.0
        %1664 = vmatmul.mubr.f32.gmra.mrb[0].mxu0 %v1591
        %v1665 = vpop.f32.mrb[0].mxu0
        %v1666 = vadd.f32 0.0, %v1665
        %v1667 = vpop.f32.mrb[0].mxu0
        %v1668 = vadd.f32 0.0, %v1667
        %1669 = vdwg.mxu0
        %v1670 = vadd.f32 %v1570, %v1660
        %v1671 = vadd.f32 %v1571, %v1662
        %v1672 = vadd.f32 %v1572, %v1666
        %v1673 = vadd.f32 %v1573, %v1668
        %s1674 = scalar_lea.vmem %s3, 96
        %v1675 = vld [vmem:[%s1674] sm:$0xff]
        %v1676 = vld [vmem:[%s1674 + $0x8] sm:$0xff]
        %1677 = vrot.lane.b32.xlu0 %v1086, 96
        %v1678 = vpop.permute.xlu0 %1677
        %1679 = vrot.lane.b32.xlu0 %v1087, 96
        %v1680 = vpop.permute.xlu0 %1679
        %1681 = vrot.lane.b32.xlu0 %v1090, 96
        %v1682 = vpop.permute.xlu0 %1681
        %v1683 = vsel %vm809, %v1678, %v1680
        %v1684 = vsel %vm809, %v1680, %v1682
        %v1688 = vsel %vm1107, %v1675, 0
        %v1691 = vsel %vm1107, %v1676, 0
        %1693 = vmatprep.subr.mxu0 %v1684
        %1694 = vmatpush1.msra.mxu0 %v1683
        %1695 = vmatprep.subr.mxu0 0.0
        %1696 = vmatpush1.msra.mxu0 0.0
        %1697 = vmatprep.subr.mxu0 0.0
        %1698 = vmatpush1.msra.mxu0 0.0
        %1699 = vmatprep.subr.mxu0 0.0
        %1700 = vmatpush1.msra.mxu0 0.0
        %1701 = vmatprep.subr.mxu0 0.0
        %1702 = vmatpush1.msra.mxu0 0.0
        %1703 = vmatprep.subr.mxu0 0.0
        %1704 = vmatpush1.msra.mxu0 0.0
        %1705 = vmatprep.subr.mxu0 0.0
        %1706 = vmatpush1.msra.mxu0 0.0
        %1707 = vmatprep.subr.mxu0 0.0
        %1708 = vmatpush1.msra.mxu0 0.0
        %1709 = vmatprep.subr.mxu0 0.0
        %1710 = vmatpush1.msra.mxu0 0.0
        %1711 = vmatprep.subr.mxu0 0.0
        %1712 = vmatpush1.msra.mxu0 0.0
        %1713 = vmatprep.subr.mxu0 0.0
        %1714 = vmatpush1.msra.mxu0 0.0
        %1715 = vmatprep.subr.mxu0 0.0
        %1716 = vmatpush1.msra.mxu0 0.0
        %1717 = vmatprep.subr.mxu0 0.0
        %1718 = vmatpush1.msra.mxu0 0.0
        %1719 = vmatprep.subr.mxu0 0.0
        %1720 = vmatpush1.msra.mxu0 0.0
        %1721 = vmatprep.subr.mxu0 0.0
        %1722 = vmatpush1.msra.mxu0 0.0
        %1723 = vmatprep.subr.mxu0 0.0
        %1724 = vmatpush1.msra.mxu0 0.0
        %1725 = vmatprep.subr.mxu0 0.0
        %1726 = vmatpush1.msra.mxu0 0.0
        %1727 = vmatprep.subr.mxu0 0.0
        %1728 = vmatpush1.msra.mxu0 0.0
        %1729 = vmatprep.subr.mxu0 0.0
        %1730 = vmatpush1.msra.mxu0 0.0
        %1731 = vmatprep.subr.mxu0 0.0
        %1732 = vmatpush1.msra.mxu0 0.0
        %1733 = vmatprep.subr.mxu0 0.0
        %1734 = vmatpush1.msra.mxu0 0.0
        %1735 = vmatprep.subr.mxu0 0.0
        %1736 = vmatpush1.msra.mxu0 0.0
        %1737 = vmatprep.subr.mxu0 0.0
        %1738 = vmatpush1.msra.mxu0 0.0
        %1739 = vmatprep.subr.mxu0 0.0
        %1740 = vmatpush1.msra.mxu0 0.0
        %1741 = vmatprep.subr.mxu0 0.0
        %1742 = vmatpush1.msra.mxu0 0.0
        %1743 = vmatprep.subr.mxu0 0.0
        %1744 = vmatpush1.msra.mxu0 0.0
        %1745 = vmatprep.subr.mxu0 0.0
        %1746 = vmatpush1.msra.mxu0 0.0
        %1747 = vmatprep.subr.mxu0 0.0
        %1748 = vmatpush1.msra.mxu0 0.0
        %1749 = vmatprep.subr.mxu0 0.0
        %1750 = vmatpush1.msra.mxu0 0.0
        %1751 = vmatprep.subr.mxu0 0.0
        %1752 = vmatpush1.msra.mxu0 0.0
        %1753 = vmatprep.subr.mxu0 0.0
        %1754 = vmatpush1.msra.mxu0 0.0
        %1755 = vmatprep.subr.mxu0 0.0
        %1756 = vmatpush1.msra.mxu0 0.0
        %1757 = vmatprep.mubr.f32.mxu0 0.0
        %1758 = vmatmul.mubr.f32.gmra.mrb[0].mxu0 %v1688
        %v1759 = vpop.f32.mrb[0].mxu0
        %v1760 = vadd.f32 0.0, %v1759
        %v1761 = vpop.f32.mrb[0].mxu0
        %v1762 = vadd.f32 0.0, %v1761
        %1763 = vmatprep.mubr.f32.mxu0 0.0
        %1764 = vmatmul.mubr.f32.gmra.mrb[0].mxu0 %v1691
        %v1765 = vpop.f32.mrb[0].mxu0
        %v1766 = vadd.f32 0.0, %v1765
        %v1767 = vpop.f32.mrb[0].mxu0
        %v1768 = vadd.f32 0.0, %v1767
        %1769 = vdwg.mxu0
        %v1770 = vadd.f32 %v1670, %v1760
        %v1771 = vadd.f32 %v1671, %v1762
        %v1772 = vadd.f32 %v1672, %v1766
        %v1773 = vadd.f32 %v1673, %v1768
        %s1774 = scalar_lea.vmem %s3, 112
        %v1775 = vld [vmem:[%s1774] sm:$0xff]
        %v1776 = vld [vmem:[%s1774 + $0x8] sm:$0xff]
        %1777 = vrot.lane.b32.xlu0 %v1086, 95
        %v1778 = vpop.permute.xlu0 %1777
        %1779 = vrot.lane.b32.xlu0 %v1087, 95
        %v1780 = vpop.permute.xlu0 %1779
        %1781 = vrot.lane.b32.xlu0 %v1090, 95
        %v1782 = vpop.permute.xlu0 %1781
        %v1783 = vsel %vm900, %v1778, %v1780
        %v1784 = vsel %vm900, %v1780, %v1782
        %v1788 = vsel %vm1107, %v1775, 0
        %v1791 = vsel %vm1107, %v1776, 0
        %1793 = vmatprep.subr.mxu0 %v1784
        %1794 = vmatpush1.msra.mxu0 %v1783
        %1795 = vmatprep.subr.mxu0 0.0
        %1796 = vmatpush1.msra.mxu0 0.0
        %1797 = vmatprep.subr.mxu0 0.0
        %1798 = vmatpush1.msra.mxu0 0.0
        %1799 = vmatprep.subr.mxu0 0.0
        %1800 = vmatpush1.msra.mxu0 0.0
        %1801 = vmatprep.subr.mxu0 0.0
        %1802 = vmatpush1.msra.mxu0 0.0
        %1803 = vmatprep.subr.mxu0 0.0
        %1804 = vmatpush1.msra.mxu0 0.0
        %1805 = vmatprep.subr.mxu0 0.0
        %1806 = vmatpush1.msra.mxu0 0.0
        %1807 = vmatprep.subr.mxu0 0.0
        %1808 = vmatpush1.msra.mxu0 0.0
        %1809 = vmatprep.subr.mxu0 0.0
        %1810 = vmatpush1.msra.mxu0 0.0
        %1811 = vmatprep.subr.mxu0 0.0
        %1812 = vmatpush1.msra.mxu0 0.0
        %1813 = vmatprep.subr.mxu0 0.0
        %1814 = vmatpush1.msra.mxu0 0.0
        %1815 = vmatprep.subr.mxu0 0.0
        %1816 = vmatpush1.msra.mxu0 0.0
        %1817 = vmatprep.subr.mxu0 0.0
        %1818 = vmatpush1.msra.mxu0 0.0
        %1819 = vmatprep.subr.mxu0 0.0
        %1820 = vmatpush1.msra.mxu0 0.0
        %1821 = vmatprep.subr.mxu0 0.0
        %1822 = vmatpush1.msra.mxu0 0.0
        %1823 = vmatprep.subr.mxu0 0.0
        %1824 = vmatpush1.msra.mxu0 0.0
        %1825 = vmatprep.subr.mxu0 0.0
        %1826 = vmatpush1.msra.mxu0 0.0
        %1827 = vmatprep.subr.mxu0 0.0
        %1828 = vmatpush1.msra.mxu0 0.0
        %1829 = vmatprep.subr.mxu0 0.0
        %1830 = vmatpush1.msra.mxu0 0.0
        %1831 = vmatprep.subr.mxu0 0.0
        %1832 = vmatpush1.msra.mxu0 0.0
        %1833 = vmatprep.subr.mxu0 0.0
        %1834 = vmatpush1.msra.mxu0 0.0
        %1835 = vmatprep.subr.mxu0 0.0
        %1836 = vmatpush1.msra.mxu0 0.0
        %1837 = vmatprep.subr.mxu0 0.0
        %1838 = vmatpush1.msra.mxu0 0.0
        %1839 = vmatprep.subr.mxu0 0.0
        %1840 = vmatpush1.msra.mxu0 0.0
        %1841 = vmatprep.subr.mxu0 0.0
        %1842 = vmatpush1.msra.mxu0 0.0
        %1843 = vmatprep.subr.mxu0 0.0
        %1844 = vmatpush1.msra.mxu0 0.0
        %1845 = vmatprep.subr.mxu0 0.0
        %1846 = vmatpush1.msra.mxu0 0.0
        %1847 = vmatprep.subr.mxu0 0.0
        %1848 = vmatpush1.msra.mxu0 0.0
        %1849 = vmatprep.subr.mxu0 0.0
        %1850 = vmatpush1.msra.mxu0 0.0
        %1851 = vmatprep.subr.mxu0 0.0
        %1852 = vmatpush1.msra.mxu0 0.0
        %1853 = vmatprep.subr.mxu0 0.0
        %1854 = vmatpush1.msra.mxu0 0.0
        %1855 = vmatprep.subr.mxu0 0.0
        %1856 = vmatpush1.msra.mxu0 0.0
        %1857 = vmatprep.mubr.f32.mxu0 0.0
        %1858 = vmatmul.mubr.f32.gmra.mrb[0].mxu0 %v1788
        %v1859 = vpop.f32.mrb[0].mxu0
        %v1860 = vadd.f32 0.0, %v1859
        %v1861 = vpop.f32.mrb[0].mxu0
        %v1862 = vadd.f32 0.0, %v1861
        %1863 = vmatprep.mubr.f32.mxu0 0.0
        %1864 = vmatmul.mubr.f32.gmra.mrb[0].mxu0 %v1791
        %v1865 = vpop.f32.mrb[0].mxu0
        %v1866 = vadd.f32 0.0, %v1865
        %v1867 = vpop.f32.mrb[0].mxu0
        %v1868 = vadd.f32 0.0, %v1867
        %1869 = vdwg.mxu0
        %v1870 = vadd.f32 %v1770, %v1860
        %v1871 = vadd.f32 %v1771, %v1862
        %v1872 = vadd.f32 %v1772, %v1866
        %v1873 = vadd.f32 %v1773, %v1868
        %s1874 = scalar_lea.vmem %s3, 128
        %v1875 = vld [vmem:[%s1874] sm:$0xff]
        %v1876 = vld [vmem:[%s1874 + $0x8] sm:$0xff]
        %1877 = vrot.lane.b32.xlu0 %v1086, 94
        %v1878 = vpop.permute.xlu0 %1877
        %1879 = vrot.lane.b32.xlu0 %v1087, 94
        %v1880 = vpop.permute.xlu0 %1879
        %1881 = vrot.lane.b32.xlu0 %v1090, 94
        %v1882 = vpop.permute.xlu0 %1881
        %v1883 = vsel %vm991, %v1878, %v1880
        %v1884 = vsel %vm991, %v1880, %v1882
        %v1888 = vsel %vm1107, %v1875, 0
        %v1891 = vsel %vm1107, %v1876, 0
        %1893 = vmatprep.subr.mxu0 %v1884
        %1894 = vmatpush1.msra.mxu0 %v1883
        %1895 = vmatprep.subr.mxu0 0.0
        %1896 = vmatpush1.msra.mxu0 0.0
        %1897 = vmatprep.subr.mxu0 0.0
        %1898 = vmatpush1.msra.mxu0 0.0
        %1899 = vmatprep.subr.mxu0 0.0
        %1900 = vmatpush1.msra.mxu0 0.0
        %1901 = vmatprep.subr.mxu0 0.0
        %1902 = vmatpush1.msra.mxu0 0.0
        %1903 = vmatprep.subr.mxu0 0.0
        %1904 = vmatpush1.msra.mxu0 0.0
        %1905 = vmatprep.subr.mxu0 0.0
        %1906 = vmatpush1.msra.mxu0 0.0
        %1907 = vmatprep.subr.mxu0 0.0
        %1908 = vmatpush1.msra.mxu0 0.0
        %1909 = vmatprep.subr.mxu0 0.0
        %1910 = vmatpush1.msra.mxu0 0.0
        %1911 = vmatprep.subr.mxu0 0.0
        %1912 = vmatpush1.msra.mxu0 0.0
        %1913 = vmatprep.subr.mxu0 0.0
        %1914 = vmatpush1.msra.mxu0 0.0
        %1915 = vmatprep.subr.mxu0 0.0
        %1916 = vmatpush1.msra.mxu0 0.0
        %1917 = vmatprep.subr.mxu0 0.0
        %1918 = vmatpush1.msra.mxu0 0.0
        %1919 = vmatprep.subr.mxu0 0.0
        %1920 = vmatpush1.msra.mxu0 0.0
        %1921 = vmatprep.subr.mxu0 0.0
        %1922 = vmatpush1.msra.mxu0 0.0
        %1923 = vmatprep.subr.mxu0 0.0
        %1924 = vmatpush1.msra.mxu0 0.0
        %1925 = vmatprep.subr.mxu0 0.0
        %1926 = vmatpush1.msra.mxu0 0.0
        %1927 = vmatprep.subr.mxu0 0.0
        %1928 = vmatpush1.msra.mxu0 0.0
        %1929 = vmatprep.subr.mxu0 0.0
        %1930 = vmatpush1.msra.mxu0 0.0
        %1931 = vmatprep.subr.mxu0 0.0
        %1932 = vmatpush1.msra.mxu0 0.0
        %1933 = vmatprep.subr.mxu0 0.0
        %1934 = vmatpush1.msra.mxu0 0.0
        %1935 = vmatprep.subr.mxu0 0.0
        %1936 = vmatpush1.msra.mxu0 0.0
        %1937 = vmatprep.subr.mxu0 0.0
        %1938 = vmatpush1.msra.mxu0 0.0
        %1939 = vmatprep.subr.mxu0 0.0
        %1940 = vmatpush1.msra.mxu0 0.0
        %1941 = vmatprep.subr.mxu0 0.0
        %1942 = vmatpush1.msra.mxu0 0.0
        %1943 = vmatprep.subr.mxu0 0.0
        %1944 = vmatpush1.msra.mxu0 0.0
        %1945 = vmatprep.subr.mxu0 0.0
        %1946 = vmatpush1.msra.mxu0 0.0
        %1947 = vmatprep.subr.mxu0 0.0
        %1948 = vmatpush1.msra.mxu0 0.0
        %1949 = vmatprep.subr.mxu0 0.0
        %1950 = vmatpush1.msra.mxu0 0.0
        %1951 = vmatprep.subr.mxu0 0.0
        %1952 = vmatpush1.msra.mxu0 0.0
        %1953 = vmatprep.subr.mxu0 0.0
        %1954 = vmatpush1.msra.mxu0 0.0
        %1955 = vmatprep.subr.mxu0 0.0
        %1956 = vmatpush1.msra.mxu0 0.0
        %1957 = vmatprep.mubr.f32.mxu0 0.0
        %1958 = vmatmul.mubr.f32.gmra.mrb[0].mxu0 %v1888
        %v1959 = vpop.f32.mrb[0].mxu0
        %v1960 = vadd.f32 0.0, %v1959
        %v1961 = vpop.f32.mrb[0].mxu0
        %v1962 = vadd.f32 0.0, %v1961
        %1963 = vmatprep.mubr.f32.mxu0 0.0
        %1964 = vmatmul.mubr.f32.gmra.mrb[0].mxu0 %v1891
        %v1965 = vpop.f32.mrb[0].mxu0
        %v1966 = vadd.f32 0.0, %v1965
        %v1967 = vpop.f32.mrb[0].mxu0
        %v1968 = vadd.f32 0.0, %v1967
        %1969 = vdwg.mxu0
        %v1970 = vadd.f32 %v1870, %v1960
        %v1971 = vadd.f32 %v1871, %v1962
        %v1972 = vadd.f32 %v1872, %v1966
        %v1973 = vadd.f32 %v1873, %v1968
        %v1974 = vld [vmem:[#allocation5] sm:$0xff]
        %v1975 = vld [vmem:[#allocation5 + $0x8] sm:$0xff]
        %1977 = vset.pattern.permute.xlu0 0
        %1978 = vperm.xlu0 %1977, %v1974
        %v1979 = vpop.permute.xlu0 %1978
        %1982 = vset.pattern.permute.xlu0 0
        %1983 = vperm.xlu0 %1982, %v1975
        %v1984 = vpop.permute.xlu0 %1983
        %v1986 = vadd.f32 %v1970, %v1979
        %v1987 = vadd.f32 %v1971, %v1979
        %v1988 = vadd.f32 %v1972, %v1984
        %v1989 = vadd.f32 %v1973, %v1984
        %v1990 = vmax.f32 %v1986, 0.0
        %v1991 = vmax.f32 %v1987, 0.0
        %v1992 = vmax.f32 %v1988, 0.0
        %v1993 = vmax.f32 %v1989, 0.0
        %1994 = vst [vmem:[%s254] sm:$0xff] %v1990
        %1995 = vst [vmem:[%s254 + $0x8] sm:$0xff] %v1991
        %1996 = vst [vmem:[%s254 + $0x10] sm:$0xff] %v1992
        %1997 = vst [vmem:[%s254 + $0x18] sm:$0xff] %v1993
        %p1998 = scmp.lt.s32.totalorder %s18, 1
        %s1999 = scalar_select %p1998, %s18, 1
        %s2000 = smul.addr %s1999, 4
        %s2001 = smul.addr %s2000, 8
        %s2002 = scalar_lea.vmem %s5, %s2001
        // Predicated region
        $region49: #{_lambda_.1} parent=39 // pred_check
          %p2003 = pneg %p146
        $region50: #{_lambda_.1} parent=39 // pred_check_branch
          %2005 = sbr.rel (%p2003) target = $region52
        $region51: #{_lambda_.1} parent=39 // pred_region
          _
        $region52: #{_lambda_.1} parent=39 // pred_fallthru
          _
      $region40: #{_lambda_.1} parent=5 // pred_fallthru
        _
      %p2006 = scmp.le.s32.totalorder 2, %s13
      // Predicated region
      $region53: #{_lambda_.1} parent=5 // pred_check
        %p2007 = pneg %p2006
      $region54: #{_lambda_.1} parent=5 // pred_check_branch
        %2009 = sbr.rel (%p2007) target = $region56
      $region55: #{_lambda_.1} parent=5 // pred_region
        %s2010 = ssub.s32 %s13, 2
        // Predicated region
        $region57: #{_lambda_.1} parent=55 // pred_check
          %p2011 = pneg %p152
        $region58: #{_lambda_.1} parent=55 // pred_check_branch
          %2013 = sbr.rel (%p2011) target = $region60
        $region59: #{_lambda_.1} parent=55 // pred_region
          %p2014 = scmp.lt.s32.totalorder %s19, 1
          %s2015 = scalar_select %p2014, %s19, 1
          %s2016 = smul.addr %s2015, 4
          %s2017 = smul.addr %s2016, 8
          %s2018 = scalar_lea.vmem %s5, %s2017
        $region60: #{_lambda_.1} parent=55 // pred_fallthru
          _
      $region56: #{_lambda_.1} parent=5 // pred_fallthru
        _
    $region6: #{_lambda_.1} parent=1 // loop_footer
      %s17 = sadd.s32 1, %s13
    $region7: #{_lambda_.1} parent=1 // loop_footer_branch
      %12 = sbr.rel target = $region3
    $region8: #{_lambda_.1} parent=1 // loop_exit
      _
    %2019 = vsyncpa [#allocation4], 1
    %s2020 = scalar_lea.sflag [#allocation4], 1
    %2021 = vsyncpa %s2020, 1
    %2022 = vsyncpa [#allocation6], 1

</llo_original>
